<compile_context>
chip_gen: v7x
topology: tpu7x:2x2x1
jax: 0.10.0
libtpu: 0.0.40
codegen_flags: <defaults>
</compile_context>

<pallas_src>
import jax
import jax.numpy as jnp
import numpy as np
from jax.experimental import pallas as pl
from jax.experimental.pallas import tpu as pltpu

LRELU_SLOPE = 0.2


def _get_padding(kernel_size, dilation=1):
    return int((kernel_size * dilation - dilation) / 2)


def _lrelu(x):
    return jnp.where(x > 0, x, LRELU_SLOPE * x)


# ----------------------------- fused MDC kernel ------------------------------

def _make_mdc_kernel(branch_cfg, cout, stride, pad_post, halo_l,
                     s1, s_len, tb, w_need):
    """branch_cfg: tuple of (kernel_size, dilation, padding) per dilated branch."""
    num_branches = len(branch_cfg)

    def kernel(*refs):
        xa_ref, xb_ref = refs[0], refs[1]          # overlapping bf16 x windows
        wbd_ref, bbd_ref, wps_ref, bp_ref = refs[2:6]
        sel_ref = refs[6] if stride > 1 else None
        o_ref = refs[-1]                           # (1, Cout, tu)

        j = pl.program_id(1)

        # Window = tile + halos.  Only the needed (128-aligned) tail of the
        # second view is read, so the concat copy stays small.
        xw = jnp.concatenate([xa_ref[0], xb_ref[0, :, :w_need]], axis=-1)

        # ---- all dilated branches: ONE block-diagonal bf16 MXU matmul ------
        cols = []
        for (ksz, dil, pad_i) in branch_cfg:
            base = halo_l - pad_i
            for k in range(ksz):
                cols.append(xw[:, base + k * dil: base + k * dil + s_len])
        im2col = jnp.concatenate(cols, axis=0)          # (sum K_i*Cin, s_len)
        z = jnp.dot(wbd_ref[...], im2col,
                    preferred_element_type=jnp.float32)  # (nb*Cout, s_len) f32
        z = _lrelu(z + bbd_ref[...])                     # per-branch bias+lrelu

        acc = z[:cout]
        for i in range(1, num_branches):
            acc = acc + z[i * cout:(i + 1) * cout]       # (Cout, s_len) f32

        # Zero positions outside the valid branch output [0, S1): PyTorch
        # zero-pads the *summed* feature map before the post conv.  (Tiny
        # VALU cost, so intentionally not gated behind pl.when.)
        t = jax.lax.broadcasted_iota(jnp.int32, (cout, s_len), 1) \
            + (j * tb - pad_post)
        acc = jnp.where((t >= 0) & (t < s1), acc, 0.0)

        # ---- post conv: stacked tap matmul + shifted adds (+ decimation) ---
        q = jnp.dot(wps_ref[...], acc.astype(jnp.bfloat16),
                    preferred_element_type=jnp.float32)  # (3*Cout, s_len) f32
        yf = (q[0 * cout:1 * cout, 0:s_len - 2] +
              q[1 * cout:2 * cout, 1:s_len - 1] +
              q[2 * cout:3 * cout, 2:s_len])             # (Cout, (tu-1)*stride+1)
        if stride == 1:
            y = yf                                       # s_len - 2 == tu
        else:
            # Single precomputed 0/1 selection matmul does the ::stride pick.
            y = jnp.dot(yf.astype(jnp.bfloat16), sel_ref[...],
                        preferred_element_type=jnp.float32)  # (Cout, tu)

        o_ref[0] = _lrelu(y + bp_ref[...]).astype(o_ref.dtype)

    return kernel


def mdc_forward(x, params, *, time_tile=256):
    """Fused MDC forward.  x: (B, Cin, T) float32, NCW layout."""
    assert time_tile % 128 == 0, "time_tile must be a multiple of 128 (lanes)"
    B, Cin, T = x.shape
    wp, bp_vec, stride, pad_post = params["post"]
    Cout = wp.shape[0]
    nb = len(params["d_convs"])

    # Static branch config; all branches must share one output length S1.
    cfg, s1 = [], None
    for (w, b, dil) in params["d_convs"]:
        assert w.shape[0] == Cout and w.shape[1] == Cin
        ksz = w.shape[2]
        pad_i = _get_padding(ksz, dil)
        length = T + 2 * pad_i - dil * (ksz - 1)
        s1 = length if s1 is None else s1
        assert length == s1, "all dilated branches must share an output length"
        cfg.append((ksz, dil, pad_i))

    halo_l = max(p for (_, _, p) in cfg)
    halo_r = max(d * (k - 1) - p for (k, d, p) in cfg)

    # PyTorch Conv1d output length for the post conv (kernel=3, dilation=1).
    l_out = (s1 + 2 * pad_post - 3) // stride + 1
    assert l_out >= 1

    tu = time_tile                      # output-time tile (lane-dense stores)
    tb = tu * stride                    # input-window advance per tile
    num_tiles = pl.cdiv(l_out, tu)
    s_len = (tu - 1) * stride + 3       # branch-sum columns needed per tile
    need = s_len + halo_l + halo_r - tb
    assert need <= tb, "time_tile too small for these dilations"
    w_need = min(tb, max(128, ((max(need, 0) + 127) // 128) * 128))

    # Pad x ONCE in HBM (shared by all branches), in bf16 (halves DMA bytes).
    # The left pad makes the window of output tile j start at padded column j*tb.
    pad_l = pad_post + halo_l
    n_x_blocks = max(num_tiles + 1, pl.cdiv(pad_l + T, tb))
    pad_r = n_x_blocks * tb - pad_l - T
    x_pad = jnp.pad(x.astype(jnp.bfloat16), ((0, 0), (0, 0), (pad_l, pad_r)))

    # ---- resident constants --------------------------------------------------
    # Block-diagonal branch weight (nb*Cout, sum K_i*Cin) + stacked bias.
    k_total = sum(k for (k, _, _) in cfg)
    wbd = jnp.zeros((nb * Cout, k_total * Cin), jnp.float32)
    bbd = jnp.zeros((nb * Cout, 1), jnp.float32)
    off = 0
    for i, ((w, b, _), (ksz, _, _)) in enumerate(zip(params["d_convs"], cfg)):
        wf = jnp.transpose(w, (0, 2, 1)).reshape(Cout, ksz * Cin)
        wbd = wbd.at[i * Cout:(i + 1) * Cout,
                     off * Cin:(off + ksz) * Cin].set(wf)
        bbd = bbd.at[i * Cout:(i + 1) * Cout, 0].set(b)
        off += ksz
    # Post-conv taps stacked as (3*Cout, Cout): rows [Wp_0; Wp_1; Wp_2].
    wps = jnp.transpose(wp, (2, 0, 1)).reshape(3 * Cout, Cout)
    bpk = bp_vec.reshape(Cout, 1).astype(jnp.float32)

    consts = [wbd.astype(jnp.bfloat16), bbd.astype(jnp.float32),
              wps.astype(jnp.bfloat16), bpk]
    s_yf = (tu - 1) * stride + 1
    if stride > 1:
        sel_np = np.zeros((s_yf, tu), np.float32)
        sel_np[np.arange(tu) * stride, np.arange(tu)] = 1.0
        consts.append(jnp.asarray(sel_np, jnp.bfloat16))

    kernel = _make_mdc_kernel(tuple(cfg), Cout, stride, pad_post, halo_l,
                              s1, s_len, tb, w_need)

    in_specs = [
        # Two views of the same padded input, offset by one block ->
        # overlapping windows cover the tile plus its halos (x padded ONCE).
        pl.BlockSpec((1, Cin, tb), lambda i, j: (i, 0, j)),
        pl.BlockSpec((1, Cin, tb), lambda i, j: (i, 0, j + 1)),
    ]
    # Constant index maps keep weights/biases/selection resident in VMEM.
    in_specs += [pl.BlockSpec(c.shape, lambda i, j: (0, 0)) for c in consts]

    flops = 2 * B * num_tiles * (
        (nb * Cout) * (k_total * Cin) * s_len            # branch matmul
        + (3 * Cout) * Cout * s_len                      # post tap matmul
        + (Cout * s_yf * tu if stride > 1 else 0))       # decimation matmul
    bytes_accessed = (2 * int(x_pad.size) * 2            # x read twice, bf16
                      + B * Cout * l_out * 4             # f32 output
                      + sum(int(np.prod(c.shape)) * c.dtype.itemsize
                            for c in consts))

    return pl.pallas_call(
        kernel,
        out_shape=jax.ShapeDtypeStruct((B, Cout, l_out), jnp.float32),
        grid=(B, num_tiles),
        in_specs=in_specs,
        out_specs=pl.BlockSpec((1, Cout, tu), lambda i, j: (i, 0, j)),
        compiler_params=pltpu.CompilerParams(
            dimension_semantics=("parallel", "parallel")),
        cost_estimate=pl.CostEstimate(flops=flops, transcendentals=0,
                                      bytes_accessed=bytes_accessed),
    )(x_pad, x_pad, *consts)


# ----------------------------- init + reference ------------------------------

def init_mdc(key, in_channels, out_channels, stride, kernel_sizes, dilations):
    d_convs = []
    last_k = last_d = None
    for ksz, dil in zip(kernel_sizes, dilations):
        key, kw, kb = jax.random.split(key, 3)
        w = 0.1 * jax.random.normal(kw, (out_channels, in_channels, ksz),
                                    jnp.float32)
        b = 0.1 * jax.random.normal(kb, (out_channels,), jnp.float32)
        d_convs.append((w, b, dil))
        last_k, last_d = ksz, dil
    key, kw, kb = jax.random.split(key, 3)
    wp = 0.1 * jax.random.normal(kw, (out_channels, out_channels, 3), jnp.float32)
    bp = 0.1 * jax.random.normal(kb, (out_channels,), jnp.float32)
    # NOTE: PyTorch MDC.post_conv uses padding from the *last* (_k, _d) of the
    # loop (not kernel_size=3); reproduced here intentionally.
    return {"d_convs": d_convs,
            "post": (wp, bp, stride, _get_padding(last_k, last_d))}


def mdc_reference(x, params):
    """Pure-JAX (XLA conv) reference used only to validate the Pallas kernel."""
    dn = ("NCH", "OIH", "NCH")
    acc = None
    for (w, b, dil) in params["d_convs"]:
        pad = _get_padding(w.shape[2], dil)
        y = jax.lax.conv_general_dilated(
            x, w, window_strides=(1,), padding=[(pad, pad)],
            rhs_dilation=(dil,), dimension_numbers=dn,
            precision=jax.lax.Precision.HIGHEST)
        y = _lrelu(y + b.reshape(1, -1, 1))
        acc = y if acc is None else acc + y
    wp, bp, stride, pad_post = params["post"]
    y = jax.lax.conv_general_dilated(
        acc, wp, window_strides=(stride,), padding=[(pad_post, pad_post)],
        dimension_numbers=dn, precision=jax.lax.Precision.HIGHEST)
    return _lrelu(y + bp.reshape(1, -1, 1))


# ----------------------------------- demo ------------------------------------

if __name__ == "__main__":
    key = jax.random.PRNGKey(0)
    pkey1, pkey2, xkey = jax.random.split(key, 3)

    B, Cin, Cout, T = 2, 8, 16, 960
    x = jax.random.normal(xkey, (B, Cin, T), jnp.float32)

    # MDC with stride=2 (stacked tap matmul + single precomputed decimation).
    params_s2 = init_mdc(pkey1, Cin, Cout, 2, kernel_sizes=[3, 5],
                         dilations=[1, 2])
    out_s2 = jax.block_until_ready(mdc_forward(x, params_s2, time_tile=256))
    ref_s2 = jax.block_until_ready(mdc_reference(x, params_s2))
    assert out_s2.shape == ref_s2.shape
    np.testing.assert_allclose(np.asarray(out_s2), np.asarray(ref_s2),
                               rtol=2e-2, atol=2e-2)

    # MDC with stride=1 (no decimation path).
    params_s1 = init_mdc(pkey2, Cin, Cout, 1, kernel_sizes=[3, 5],
                         dilations=[1, 2])
    out_s1 = jax.block_until_ready(mdc_forward(x, params_s1, time_tile=512))
    ref_s1 = jax.block_until_ready(mdc_reference(x, params_s1))
    assert out_s1.shape == ref_s1.shape
    np.testing.assert_allclose(np.asarray(out_s1), np.asarray(ref_s1),
                               rtol=2e-2, atol=2e-2)

    print("KERNEL_OK")
</pallas_src>

<mosaic_0001>
module attributes {stable_mosaic.version = 11 : i64} {
  func.func @kernel(%arg0: i32, %arg1: i32, %arg2: memref<1x8x512xbf16, #tpu.memory_space<vmem>>, %arg3: memref<1x8x512xbf16, #tpu.memory_space<vmem>>, %arg4: memref<32x64xbf16, #tpu.memory_space<vmem>>, %arg5: memref<32x1xf32, #tpu.memory_space<vmem>>, %arg6: memref<48x16xbf16, #tpu.memory_space<vmem>>, %arg7: memref<16x1xf32, #tpu.memory_space<vmem>>, %arg8: memref<511x256xbf16, #tpu.memory_space<vmem>>, %arg9: memref<1x16x256xf32, #tpu.memory_space<vmem>>) attributes {dimension_semantics = [#tpu.dimension_semantics<parallel>, #tpu.dimension_semantics<parallel>], iteration_bounds = array<i64: 2, 2>, scalar_prefetch = 0 : i64, scratch_operands = 0 : i64, tpu.core_type = #tpu.core_type<tc>, window_params = [{transform_indices = @transform_0, window_bounds = array<i64: 1, 8, 512>}, {transform_indices = @transform_1, window_bounds = array<i64: 1, 8, 512>}, {pipeline_mode = #tpu.pipeline_mode<synchronous>, transform_indices = @transform_2, window_bounds = array<i64: 32, 64>}, {pipeline_mode = #tpu.pipeline_mode<synchronous>, transform_indices = @transform_3, window_bounds = array<i64: 32, 1>}, {pipeline_mode = #tpu.pipeline_mode<synchronous>, transform_indices = @transform_4, window_bounds = array<i64: 48, 16>}, {pipeline_mode = #tpu.pipeline_mode<synchronous>, transform_indices = @transform_5, window_bounds = array<i64: 16, 1>}, {pipeline_mode = #tpu.pipeline_mode<synchronous>, transform_indices = @transform_6, window_bounds = array<i64: 511, 256>}, {transform_indices = @transform_7, window_bounds = array<i64: 1, 16, 256>}]} {
    %c0 = arith.constant 0 : index
    %c0_0 = arith.constant 0 : index
    %c0_1 = arith.constant 0 : index
    %0 = vector.load %arg2[%c0, %c0_0, %c0_1] : memref<1x8x512xbf16, #tpu.memory_space<vmem>>, vector<1x8x512xbf16>
    %1 = vector.shape_cast %0 : vector<1x8x512xbf16> to vector<8x512xbf16>
    %c0_2 = arith.constant 0 : index
    %c0_3 = arith.constant 0 : index
    %c0_4 = arith.constant 0 : index
    %2 = vector.load %arg3[%c0_2, %c0_3, %c0_4] : memref<1x8x512xbf16, #tpu.memory_space<vmem>>, vector<1x8x128xbf16>
    %3 = vector.shape_cast %2 : vector<1x8x128xbf16> to vector<8x128xbf16>
    %4 = tpu.concatenate %1, %3 in 1 : vector<8x512xbf16>, vector<8x128xbf16> -> vector<8x640xbf16>
    %5 = vector.extract_strided_slice %4 {offsets = [0, 3], sizes = [8, 513], strides = [1, 1]} : vector<8x640xbf16> to vector<8x513xbf16>
    %6 = vector.extract_strided_slice %4 {offsets = [0, 4], sizes = [8, 513], strides = [1, 1]} : vector<8x640xbf16> to vector<8x513xbf16>
    %7 = vector.extract_strided_slice %4 {offsets = [0, 5], sizes = [8, 513], strides = [1, 1]} : vector<8x640xbf16> to vector<8x513xbf16>
    %8 = vector.extract_strided_slice %4 {offsets = [0, 0], sizes = [8, 513], strides = [1, 1]} : vector<8x640xbf16> to vector<8x513xbf16>
    %9 = vector.extract_strided_slice %4 {offsets = [0, 2], sizes = [8, 513], strides = [1, 1]} : vector<8x640xbf16> to vector<8x513xbf16>
    %10 = vector.extract_strided_slice %4 {offsets = [0, 4], sizes = [8, 513], strides = [1, 1]} : vector<8x640xbf16> to vector<8x513xbf16>
    %11 = vector.extract_strided_slice %4 {offsets = [0, 6], sizes = [8, 513], strides = [1, 1]} : vector<8x640xbf16> to vector<8x513xbf16>
    %12 = vector.extract_strided_slice %4 {offsets = [0, 8], sizes = [8, 513], strides = [1, 1]} : vector<8x640xbf16> to vector<8x513xbf16>
    %13 = tpu.concatenate %5, %6, %7, %8, %9, %10, %11, %12 in 0 : vector<8x513xbf16>, vector<8x513xbf16>, vector<8x513xbf16>, vector<8x513xbf16>, vector<8x513xbf16>, vector<8x513xbf16>, vector<8x513xbf16>, vector<8x513xbf16> -> vector<64x513xbf16>
    %c0_5 = arith.constant 0 : index
    %c0_6 = arith.constant 0 : index
    %14 = vector.load %arg4[%c0_5, %c0_6] : memref<32x64xbf16, #tpu.memory_space<vmem>>, vector<32x64xbf16>
    %cst = arith.constant dense<0.000000e+00> : vector<32x513xf32>
    %15 = tpu.matmul %14, %13, %cst {dimension_numbers = #tpu.dot_dimension_numbers<[1], [0], [0], [1], [0, 0, 1, 1], [], []>} : vector<32x64xbf16>, vector<64x513xbf16>, vector<32x513xf32> -> vector<32x513xf32>
    %c0_7 = arith.constant 0 : index
    %c0_8 = arith.constant 0 : index
    %16 = vector.load %arg5[%c0_7, %c0_8] : memref<32x1xf32, #tpu.memory_space<vmem>>, vector<32x1xf32>
    %17 = vector.broadcast %16 : vector<32x1xf32> to vector<32x513xf32>
    %18 = arith.addf %15, %17 : vector<32x513xf32>
    %cst_9 = arith.constant 0.000000e+00 : f32
    %19 = vector.broadcast %cst_9 : f32 to vector<32x513xf32>
    %20 = arith.cmpf ogt, %18, %19 : vector<32x513xf32>
    %cst_10 = arith.constant 2.000000e-01 : f32
    %21 = vector.broadcast %cst_10 : f32 to vector<32x513xf32>
    %22 = arith.mulf %21, %18 : vector<32x513xf32>
    %23 = arith.select %20, %18, %22 : vector<32x513xi1>, vector<32x513xf32>
    %24 = vector.extract_strided_slice %23 {offsets = [0, 0], sizes = [16, 513], strides = [1, 1]} : vector<32x513xf32> to vector<16x513xf32>
    %25 = vector.extract_strided_slice %23 {offsets = [16, 0], sizes = [16, 513], strides = [1, 1]} : vector<32x513xf32> to vector<16x513xf32>
    %26 = arith.addf %24, %25 : vector<16x513xf32>
    %27 = tpu.iota {dimensions = array<i32: 1>} : vector<16x513xi32>
    %c512_i32 = arith.constant 512 : i32
    %28 = arith.muli %arg1, %c512_i32 : i32
    %c4_i32 = arith.constant 4 : i32
    %29 = arith.subi %28, %c4_i32 : i32
    %30 = vector.broadcast %29 : i32 to vector<16x513xi32>
    %31 = arith.addi %27, %30 : vector<16x513xi32>
    %c0_i32 = arith.constant 0 : i32
    %32 = vector.broadcast %c0_i32 : i32 to vector<16x513xi32>
    %33 = arith.cmpi sge, %31, %32 : vector<16x513xi32>
    %c960_i32 = arith.constant 960 : i32
    %34 = vector.broadcast %c960_i32 : i32 to vector<16x513xi32>
    %35 = arith.cmpi slt, %31, %34 : vector<16x513xi32>
    %36 = arith.andi %33, %35 : vector<16x513xi1>
    %cst_11 = arith.constant 0.000000e+00 : f32
    %37 = vector.broadcast %cst_11 : f32 to vector<16x513xf32>
    %38 = arith.select %36, %26, %37 : vector<16x513xi1>, vector<16x513xf32>
    %c0_12 = arith.constant 0 : index
    %c0_13 = arith.constant 0 : index
    %39 = vector.load %arg6[%c0_12, %c0_13] : memref<48x16xbf16, #tpu.memory_space<vmem>>, vector<48x16xbf16>
    %40 = arith.truncf %38 : vector<16x513xf32> to vector<16x513xbf16>
    %cst_14 = arith.constant dense<0.000000e+00> : vector<48x513xf32>
    %41 = tpu.matmul %39, %40, %cst_14 {dimension_numbers = #tpu.dot_dimension_numbers<[1], [0], [0], [1], [0, 0, 1, 1], [], []>} : vector<48x16xbf16>, vector<16x513xbf16>, vector<48x513xf32> -> vector<48x513xf32>
    %42 = vector.extract_strided_slice %41 {offsets = [0, 0], sizes = [16, 511], strides = [1, 1]} : vector<48x513xf32> to vector<16x511xf32>
    %43 = vector.extract_strided_slice %41 {offsets = [16, 1], sizes = [16, 511], strides = [1, 1]} : vector<48x513xf32> to vector<16x511xf32>
    %44 = arith.addf %42, %43 : vector<16x511xf32>
    %45 = vector.extract_strided_slice %41 {offsets = [32, 2], sizes = [16, 511], strides = [1, 1]} : vector<48x513xf32> to vector<16x511xf32>
    %46 = arith.addf %44, %45 : vector<16x511xf32>
    %47 = arith.truncf %46 : vector<16x511xf32> to vector<16x511xbf16>
    %c0_15 = arith.constant 0 : index
    %c0_16 = arith.constant 0 : index
    %48 = vector.load %arg8[%c0_15, %c0_16] : memref<511x256xbf16, #tpu.memory_space<vmem>>, vector<511x256xbf16>
    %cst_17 = arith.constant dense<0.000000e+00> : vector<16x256xf32>
    %49 = tpu.matmul %47, %48, %cst_17 {dimension_numbers = #tpu.dot_dimension_numbers<[1], [0], [0], [1], [0, 0, 1, 1], [], []>} : vector<16x511xbf16>, vector<511x256xbf16>, vector<16x256xf32> -> vector<16x256xf32>
    %c0_18 = arith.constant 0 : index
    %c0_19 = arith.constant 0 : index
    %50 = vector.load %arg7[%c0_18, %c0_19] : memref<16x1xf32, #tpu.memory_space<vmem>>, vector<16x1xf32>
    %51 = vector.broadcast %50 : vector<16x1xf32> to vector<16x256xf32>
    %52 = arith.addf %49, %51 : vector<16x256xf32>
    %cst_20 = arith.constant 0.000000e+00 : f32
    %53 = vector.broadcast %cst_20 : f32 to vector<16x256xf32>
    %54 = arith.cmpf ogt, %52, %53 : vector<16x256xf32>
    %cst_21 = arith.constant 2.000000e-01 : f32
    %55 = vector.broadcast %cst_21 : f32 to vector<16x256xf32>
    %56 = arith.mulf %55, %52 : vector<16x256xf32>
    %57 = arith.select %54, %52, %56 : vector<16x256xi1>, vector<16x256xf32>
    %c0_22 = arith.constant 0 : index
    %c0_23 = arith.constant 0 : index
    %c0_24 = arith.constant 0 : index
    %58 = vector.load %arg9[%c0_22, %c0_23, %c0_24] : memref<1x16x256xf32, #tpu.memory_space<vmem>>, vector<1x16x256xf32>
    %59 = vector.shape_cast %58 : vector<1x16x256xf32> to vector<16x256xf32>
    %60 = vector.shape_cast %57 : vector<16x256xf32> to vector<1x16x256xf32>
    tpu.vector_store %arg9[%c0_22, %c0_23, %c0_24], %60 {strides = array<i32>} : memref<1x16x256xf32, #tpu.memory_space<vmem>>, vector<1x16x256xf32>,
    return
  }
  func.func @transform_0(%arg0: i32, %arg1: i32) -> (i32, i32, i32) {
    %c0_i32 = arith.constant 0 : i32
    %c0_i32_0 = arith.constant 0 : i32
    return %arg0, %c0_i32, %arg1 : i32, i32, i32
  }
  func.func @transform_1(%arg0: i32, %arg1: i32) -> (i32, i32, i32) {
    %c1_i32 = arith.constant 1 : i32
    %0 = arith.addi %arg1, %c1_i32 : i32
    %c0_i32 = arith.constant 0 : i32
    %c0_i32_0 = arith.constant 0 : i32
    return %arg0, %c0_i32, %0 : i32, i32, i32
  }
  func.func @transform_2(%arg0: i32, %arg1: i32) -> (i32, i32) {
    %c0_i32 = arith.constant 0 : i32
    %c0_i32_0 = arith.constant 0 : i32
    %c0_i32_1 = arith.constant 0 : i32
    return %c0_i32, %c0_i32_0 : i32, i32
  }
  func.func @transform_3(%arg0: i32, %arg1: i32) -> (i32, i32) {
    %c0_i32 = arith.constant 0 : i32
    %c0_i32_0 = arith.constant 0 : i32
    %c0_i32_1 = arith.constant 0 : i32
    return %c0_i32, %c0_i32_0 : i32, i32
  }
  func.func @transform_4(%arg0: i32, %arg1: i32) -> (i32, i32) {
    %c0_i32 = arith.constant 0 : i32
    %c0_i32_0 = arith.constant 0 : i32
    %c0_i32_1 = arith.constant 0 : i32
    return %c0_i32, %c0_i32_0 : i32, i32
  }
  func.func @transform_5(%arg0: i32, %arg1: i32) -> (i32, i32) {
    %c0_i32 = arith.constant 0 : i32
    %c0_i32_0 = arith.constant 0 : i32
    %c0_i32_1 = arith.constant 0 : i32
    return %c0_i32, %c0_i32_0 : i32, i32
  }
  func.func @transform_6(%arg0: i32, %arg1: i32) -> (i32, i32) {
    %c0_i32 = arith.constant 0 : i32
    %c0_i32_0 = arith.constant 0 : i32
    %c0_i32_1 = arith.constant 0 : i32
    return %c0_i32, %c0_i32_0 : i32, i32
  }
  func.func @transform_7(%arg0: i32, %arg1: i32) -> (i32, i32, i32) {
    %c0_i32 = arith.constant 0 : i32
    %c0_i32_0 = arith.constant 0 : i32
    return %arg0, %c0_i32, %arg1 : i32, i32, i32
  }
}

</mosaic_0001>

<llo_original>
// kernel: tpu_custom_call.1
$region0: #{tpu_custom_call.1}
  #allocation0 [shape = 'u32[]', space=smem, size = 0x4, offset = 0x4, fixed_abs, tag = 'smem constant byte address 0x4 - core index']
  #allocation1 [shape = 'u32[144,128]{1,0:T(1,128)}', space=vmem, size = 0x12000, scoped, tag = 'internal scratch']
  %s0 = inlined_call_operand.hbm [shape: bf16[2,8,1536], index: 0, kind: input, shape index: {}]
  %s1 = inlined_call_operand.hbm [shape: bf16[2,8,1536], index: 1, kind: input, shape index: {}]
  %s2 = inlined_call_operand.vmem [shape: bf16[32,64], index: 2, kind: input, shape index: {}]
  %s3 = inlined_call_operand.vmem [shape: f32[32,1], index: 3, kind: input, shape index: {}]
  %s4 = inlined_call_operand.vmem [shape: bf16[48,16], index: 4, kind: input, shape index: {}]
  %s5 = inlined_call_operand.vmem [shape: f32[16,1], index: 5, kind: input, shape index: {}]
  %s6 = inlined_call_operand.hbm [shape: bf16[511,256], index: 6, kind: input, shape index: {}]
  %s7 = inlined_call_operand.hbm [shape: f32[2,16,483], index: 7, kind: output, shape index: {}]
  %s8 = sld [smem:[#allocation0]]
  $region73: #{tpu_custom_call.1} parent=0
    _
  %s10 = ssub.s32 1, %s8
  %s11 = scalar_select 0, %s10, %s8
  $region1: #{tpu_custom_call.1} parent=0
    #allocation2 [shape = 'u8[16384]{0}', space=vmem, size = 0x4000, scoped, tag = 'input window, operand 0']
    #allocation3 [shape = 's32[2]{0}', space=sflag, size = 0x8, scoped, tag = 'scoped memory for tpu_custom_call.1']
    #allocation4 [shape = 's32[2]{0}', space=sflag, size = 0x8, scoped, tag = 'scoped memory for tpu_custom_call.1']
    #allocation5 [shape = 'u8[16384]{0}', space=vmem, size = 0x4000, scoped, tag = 'input window, operand 1']
    #allocation6 [shape = 's32[2]{0}', space=sflag, size = 0x8, scoped, tag = 'scoped memory for tpu_custom_call.1']
    #allocation7 [shape = 'u8[262144]{0}', space=vmem, size = 0x40000, scoped, tag = 'input window, operand 6, single buffered']
    #allocation8 [shape = 'u8[32768]{0}', space=vmem, size = 0x8000, scoped, tag = 'output window, operand 0']
    %12 = vsyncpa [#allocation3], 0
    %s13 = scalar_lea.sflag [#allocation3], 1
    %14 = vsyncpa %s13, 0
    %15 = vsyncpa [#allocation6], 0
    %s16 = scalar_lea.sflag [#allocation6], 1
    %17 = vsyncpa %s16, 0
    %18 = vsyncpa [#allocation4], 0
    %s19 = scalar_lea.sflag [#allocation4], 1
    %20 = vsyncpa %s19, 0
    loop: start=0, step=1, limit=6
    $region2: #{tpu_custom_call.1} parent=1 // loop_pre_header
      _
    $region3: #{tpu_custom_call.1} parent=1 // loop_header
      %s22 = sphi 0, %s26
      %p23 = scmp.ge.s32.totalorder %s22, 6
      %s29 = sphi 0, %s41
      %s30 = sphi 0, %s37
      %s31 = sphi 0, %s29
      %s32 = sphi 0, %s30
      %s33 = sphi 0, %s31
      %s34 = sphi 0, %s32
      %s46 = sphi 0, %s48
      %s49 = sphi 0, %s46
      %s50 = sphi 0, %s49
      %s66 = sphi 0, %s50
      %s76 = sphi 0, %s78
      %s79 = sphi 0, %s76
      %s80 = sphi 0, %s79
      %s96 = sphi 0, %s80
      %s100 = sphi 0, %s100
      %s102 = sphi 0, %s100
      %s103 = sphi 0, %s102
      %s117 = sphi 0, %s103
      %s121 = sphi 0, %s121
      %s123 = sphi 0, %s121
      %s124 = sphi 0, %s123
      %s138 = sphi 0, %s124
      %s142 = sphi 0, %s142
      %s144 = sphi 0, %s142
      %s145 = sphi 0, %s144
      %s159 = sphi 0, %s145
      %s163 = sphi 0, %s163
      %s165 = sphi 0, %s163
      %s166 = sphi 0, %s165
      %s180 = sphi 0, %s166
      %s184 = sphi 0, %s184
      %s186 = sphi 0, %s184
      %s187 = sphi 0, %s186
      %s201 = sphi 0, %s187
      %s209 = sphi 0, %s211
      %s212 = sphi 0, %s209
      %s213 = sphi 0, %s212
      %s229 = sphi 0, %s213
    $region4: #{tpu_custom_call.1} parent=1 // loop_header_branch
      %25 = sbr.rel (%p23) target = $region8
    $region5: #{tpu_custom_call.1} parent=1 // loop_body
      %s27 = ssub.s32 %s22, 1
      %s28 = ssub.s32 %s22, 2
      %s35 = sadd.s32 1, %s30
      %p36 = scmp.ge.s32.totalorder %s35, 2
      %s37 = scalar_select %p36, 0, %s35
      %s38 = sadd.s32 1, %s29
      %s39 = scalar_select %p36, %s38, %s29
      %p40 = scmp.ge.s32.totalorder %s39, 2
      %s41 = scalar_select %p40, 0, %s39
      %s42 = ssub.s32 %s29, %s41
      %s43 = ssub.s32 %s30, %s37
      %s44 = sor.u32 %s42, %s43
      %p45 = scmp.eq.s32.totalorder %s44, 0
      %s47 = sadd.s32 %s46, 1
      %s48 = scalar_select %p45, %s46, %s47
      %p51 = pneg %p45
      %p52 = scmp.eq.s32.totalorder %s22, 3
      %p53 = por %p51, %p52
      %p54 = scmp.ne.s32.totalorder %s46, %s49
      %p55 = scmp.eq.s32.totalorder %s22, 0
      %p56 = por %p54, %p55
      %p57 = scmp.ne.s32.totalorder %s46, %s49
      %p58 = scmp.eq.s32.totalorder %s27, 3
      %p59 = por %p57, %p58
      %p60 = scmp.ne.s32.totalorder %s49, %s50
      %p61 = scmp.eq.s32.totalorder %s27, 0
      %p62 = por %p60, %p61
      %p63 = scmp.ne.s32.totalorder %s49, %s50
      %p64 = scmp.eq.s32.totalorder %s28, 3
      %p65 = por %p63, %p64
      %p67 = scmp.ne.s32.totalorder %s50, %s66
      %p68 = scmp.eq.s32.totalorder %s28, 0
      %p69 = por %p67, %p68
      %s70 = sadd.s32 %s30, 1
      %s71 = sadd.s32 %s37, 1
      %s72 = ssub.s32 %s29, %s41
      %s73 = ssub.s32 %s70, %s71
      %s74 = sor.u32 %s72, %s73
      %p75 = scmp.eq.s32.totalorder %s74, 0
      %s77 = sadd.s32 %s76, 1
      %s78 = scalar_select %p75, %s76, %s77
      %p81 = pneg %p75
      %p82 = scmp.eq.s32.totalorder %s22, 3
      %p83 = por %p81, %p82
      %p84 = scmp.ne.s32.totalorder %s76, %s79
      %p85 = scmp.eq.s32.totalorder %s22, 0
      %p86 = por %p84, %p85
      %p87 = scmp.ne.s32.totalorder %s76, %s79
      %p88 = scmp.eq.s32.totalorder %s27, 3
      %p89 = por %p87, %p88
      %p90 = scmp.ne.s32.totalorder %s79, %s80
      %p91 = scmp.eq.s32.totalorder %s27, 0
      %p92 = por %p90, %p91
      %p93 = scmp.ne.s32.totalorder %s79, %s80
      %p94 = scmp.eq.s32.totalorder %s28, 3
      %p95 = por %p93, %p94
      %p97 = scmp.ne.s32.totalorder %s80, %s96
      %p98 = scmp.eq.s32.totalorder %s28, 0
      %p99 = por %p97, %p98
      %s101 = sadd.s32 %s100, 1
      %p104 = scmp.eq.s32.totalorder %s22, 3
      %p105 = scmp.ne.s32.totalorder %s100, %s102
      %p106 = scmp.eq.s32.totalorder %s22, 0
      %p107 = por %p105, %p106
      %p108 = scmp.ne.s32.totalorder %s100, %s102
      %p109 = scmp.eq.s32.totalorder %s27, 3
      %p110 = por %p108, %p109
      %p111 = scmp.ne.s32.totalorder %s102, %s103
      %p112 = scmp.eq.s32.totalorder %s27, 0
      %p113 = por %p111, %p112
      %p114 = scmp.ne.s32.totalorder %s102, %s103
      %p115 = scmp.eq.s32.totalorder %s28, 3
      %p116 = por %p114, %p115
      %p118 = scmp.ne.s32.totalorder %s103, %s117
      %p119 = scmp.eq.s32.totalorder %s28, 0
      %p120 = por %p118, %p119
      %s122 = sadd.s32 %s121, 1
      %p125 = scmp.eq.s32.totalorder %s22, 3
      %p126 = scmp.ne.s32.totalorder %s121, %s123
      %p127 = scmp.eq.s32.totalorder %s22, 0
      %p128 = por %p126, %p127
      %p129 = scmp.ne.s32.totalorder %s121, %s123
      %p130 = scmp.eq.s32.totalorder %s27, 3
      %p131 = por %p129, %p130
      %p132 = scmp.ne.s32.totalorder %s123, %s124
      %p133 = scmp.eq.s32.totalorder %s27, 0
      %p134 = por %p132, %p133
      %p135 = scmp.ne.s32.totalorder %s123, %s124
      %p136 = scmp.eq.s32.totalorder %s28, 3
      %p137 = por %p135, %p136
      %p139 = scmp.ne.s32.totalorder %s124, %s138
      %p140 = scmp.eq.s32.totalorder %s28, 0
      %p141 = por %p139, %p140
      %s143 = sadd.s32 %s142, 1
      %p146 = scmp.eq.s32.totalorder %s22, 3
      %p147 = scmp.ne.s32.totalorder %s142, %s144
      %p148 = scmp.eq.s32.totalorder %s22, 0
      %p149 = por %p147, %p148
      %p150 = scmp.ne.s32.totalorder %s142, %s144
      %p151 = scmp.eq.s32.totalorder %s27, 3
      %p152 = por %p150, %p151
      %p153 = scmp.ne.s32.totalorder %s144, %s145
      %p154 = scmp.eq.s32.totalorder %s27, 0
      %p155 = por %p153, %p154
      %p156 = scmp.ne.s32.totalorder %s144, %s145
      %p157 = scmp.eq.s32.totalorder %s28, 3
      %p158 = por %p156, %p157
      %p160 = scmp.ne.s32.totalorder %s145, %s159
      %p161 = scmp.eq.s32.totalorder %s28, 0
      %p162 = por %p160, %p161
      %s164 = sadd.s32 %s163, 1
      %p167 = scmp.eq.s32.totalorder %s22, 3
      %p168 = scmp.ne.s32.totalorder %s163, %s165
      %p169 = scmp.eq.s32.totalorder %s22, 0
      %p170 = por %p168, %p169
      %p171 = scmp.ne.s32.totalorder %s163, %s165
      %p172 = scmp.eq.s32.totalorder %s27, 3
      %p173 = por %p171, %p172
      %p174 = scmp.ne.s32.totalorder %s165, %s166
      %p175 = scmp.eq.s32.totalorder %s27, 0
      %p176 = por %p174, %p175
      %p177 = scmp.ne.s32.totalorder %s165, %s166
      %p178 = scmp.eq.s32.totalorder %s28, 3
      %p179 = por %p177, %p178
      %p181 = scmp.ne.s32.totalorder %s166, %s180
      %p182 = scmp.eq.s32.totalorder %s28, 0
      %p183 = por %p181, %p182
      %s185 = sadd.s32 %s184, 1
      %p188 = scmp.eq.s32.totalorder %s22, 3
      %p189 = scmp.ne.s32.totalorder %s184, %s186
      %p190 = scmp.eq.s32.totalorder %s22, 0
      %p191 = por %p189, %p190
      %p192 = scmp.ne.s32.totalorder %s184, %s186
      %p193 = scmp.eq.s32.totalorder %s27, 3
      %p194 = por %p192, %p193
      %p195 = scmp.ne.s32.totalorder %s186, %s187
      %p196 = scmp.eq.s32.totalorder %s27, 0
      %p197 = por %p195, %p196
      %p198 = scmp.ne.s32.totalorder %s186, %s187
      %p199 = scmp.eq.s32.totalorder %s28, 3
      %p200 = por %p198, %p199
      %p202 = scmp.ne.s32.totalorder %s187, %s201
      %p203 = scmp.eq.s32.totalorder %s28, 0
      %p204 = por %p202, %p203
      %s205 = ssub.s32 %s29, %s41
      %s206 = ssub.s32 %s30, %s37
      %s207 = sor.u32 %s205, %s206
      %p208 = scmp.eq.s32.totalorder %s207, 0
      %s210 = sadd.s32 %s209, 1
      %s211 = scalar_select %p208, %s209, %s210
      %p214 = pneg %p208
      %p215 = scmp.eq.s32.totalorder %s22, 3
      %p216 = por %p214, %p215
      %p217 = scmp.ne.s32.totalorder %s209, %s212
      %p218 = scmp.eq.s32.totalorder %s22, 0
      %p219 = por %p217, %p218
      %p220 = scmp.ne.s32.totalorder %s209, %s212
      %p221 = scmp.eq.s32.totalorder %s27, 3
      %p222 = por %p220, %p221
      %p223 = scmp.ne.s32.totalorder %s212, %s213
      %p224 = scmp.eq.s32.totalorder %s27, 0
      %p225 = por %p223, %p224
      %p226 = scmp.ne.s32.totalorder %s212, %s213
      %p227 = scmp.eq.s32.totalorder %s28, 3
      %p228 = por %p226, %p227
      %p230 = scmp.ne.s32.totalorder %s213, %s229
      %p231 = scmp.eq.s32.totalorder %s28, 0
      %p232 = por %p230, %p231
      %p233 = scmp.le.s32.totalorder 1, %s22
      %p234 = scmp.lt.s32.totalorder %s22, 5
      %p235 = pnand %p233, %p234
      %p236 = pneg %p235
      // Predicated region
      $region9: #{tpu_custom_call.1} parent=5 // pred_check
        _
      $region10: #{tpu_custom_call.1} parent=5 // pred_check_branch
        %238 = sbr.rel (%p235) target = $region12
      $region11: #{tpu_custom_call.1} parent=5 // pred_region
        %s239 = ssub.s32 %s22, 1
        // Predicated region
        $region13: #{tpu_custom_call.1} parent=11 // pred_check
          %p240 = pneg %p113
        $region14: #{tpu_custom_call.1} parent=11 // pred_check_branch
          %242 = sbr.rel (%p240) target = $region16
        $region15: #{tpu_custom_call.1} parent=11 // pred_region
          _
        $region16: #{tpu_custom_call.1} parent=11 // pred_fallthru
          _
        // Predicated region
        $region17: #{tpu_custom_call.1} parent=11 // pred_check
          %p243 = pneg %p134
        $region18: #{tpu_custom_call.1} parent=11 // pred_check_branch
          %245 = sbr.rel (%p243) target = $region20
        $region19: #{tpu_custom_call.1} parent=11 // pred_region
          _
        $region20: #{tpu_custom_call.1} parent=11 // pred_fallthru
          _
        // Predicated region
        $region21: #{tpu_custom_call.1} parent=11 // pred_check
          %p246 = pneg %p155
        $region22: #{tpu_custom_call.1} parent=11 // pred_check_branch
          %248 = sbr.rel (%p246) target = $region24
        $region23: #{tpu_custom_call.1} parent=11 // pred_region
          _
        $region24: #{tpu_custom_call.1} parent=11 // pred_fallthru
          _
        // Predicated region
        $region25: #{tpu_custom_call.1} parent=11 // pred_check
          %p249 = pneg %p176
        $region26: #{tpu_custom_call.1} parent=11 // pred_check_branch
          %251 = sbr.rel (%p249) target = $region28
        $region27: #{tpu_custom_call.1} parent=11 // pred_region
          _
        $region28: #{tpu_custom_call.1} parent=11 // pred_fallthru
          _
        // Predicated region
        $region29: #{tpu_custom_call.1} parent=11 // pred_check
          %p252 = pneg %p197
        $region30: #{tpu_custom_call.1} parent=11 // pred_check_branch
          %254 = sbr.rel (%p252) target = $region32
        $region31: #{tpu_custom_call.1} parent=11 // pred_region
          %s256 = ssub.s32 8192, 8192
          %257 = vsyncadd [#allocation6], %s256
          %s258 = sshll.u32 [#allocation7], 4
          %s259 = int_to_ptr.vmem [resolvable:$true] %s258
          %264 = dma.hbm_to_vmem [thread:$0]  %s6, 8192, %s259, [#allocation6], 128, 128, 8
        $region32: #{tpu_custom_call.1} parent=11 // pred_fallthru
          _
      $region12: #{tpu_custom_call.1} parent=5 // pred_fallthru
        _
      %p265 = scmp.lt.s32.totalorder %s22, 4
      // Predicated region
      $region33: #{tpu_custom_call.1} parent=5 // pred_check
        %p266 = pneg %p265
      $region34: #{tpu_custom_call.1} parent=5 // pred_check_branch
        %268 = sbr.rel (%p266) target = $region36
      $region35: #{tpu_custom_call.1} parent=5 // pred_region
        // Predicated region
        $region37: #{tpu_custom_call.1} parent=35 // pred_check
          %p269 = pneg %p56
        $region38: #{tpu_custom_call.1} parent=35 // pred_check_branch
          %271 = sbr.rel (%p269) target = $region40
        $region39: #{tpu_custom_call.1} parent=35 // pred_region
          %s272 = sand.u32 %s46, 1
          %s273 = scalar_lea.sflag [#allocation3], %s272
          %s274 = sand.u32 %s46, 1
          %s275 = smul.addr %s274, 16
          %s276 = scalar_lea.vmem [#allocation2], %s275
          %s277 = smul.u32 4, %s30
          %s279 = ssub.s32 256, 256
          %280 = vsyncadd %s273, %s279
          %s281 = smul.addr %s29, 12
          %s282 = sadd.s32 %s277, %s281
          %s283 = smul.addr %s282, 64
          %s284 = scalar_lea.hbm %s0, %s283
          %s286 = sshll.u32 %s276, 4
          %s287 = int_to_ptr.vmem [resolvable:$true] %s286
          %289 = dma.hbm_to_vmem [thread:$0]  %s284, 256, %s287, %s273
        $region40: #{tpu_custom_call.1} parent=35 // pred_fallthru
          _
        // Predicated region
        $region41: #{tpu_custom_call.1} parent=35 // pred_check
          %p290 = pneg %p86
        $region42: #{tpu_custom_call.1} parent=35 // pred_check_branch
          %292 = sbr.rel (%p290) target = $region44
        $region43: #{tpu_custom_call.1} parent=35 // pred_region
          %s293 = sand.u32 %s22, 1
          %s294 = scalar_lea.sflag [#allocation6], %s293
          %s295 = sand.u32 %s76, 1
          %s296 = smul.addr %s295, 16
          %s297 = scalar_lea.vmem [#allocation5], %s296
          %s298 = sadd.s32 %s30, 1
          %s299 = smul.u32 4, %s298
          %s301 = ssub.s32 256, 256
          %302 = vsyncadd %s294, %s301
          %s303 = smul.addr %s29, 12
          %s304 = sadd.s32 %s299, %s303
          %s305 = smul.addr %s304, 64
          %s306 = scalar_lea.hbm %s1, %s305
          %s308 = sshll.u32 %s297, 4
          %s309 = int_to_ptr.vmem [resolvable:$true] %s308
          %311 = dma.hbm_to_vmem [thread:$0]  %s306, 256, %s309, %s294
        $region44: #{tpu_custom_call.1} parent=35 // pred_fallthru
          _
      $region36: #{tpu_custom_call.1} parent=5 // pred_fallthru
        _
      %p312 = scmp.le.s32.totalorder 1, %s22
      %p313 = scmp.lt.s32.totalorder %s22, 5
      %p314 = pnand %p312, %p313
      %p315 = pneg %p314
      // Predicated region
      $region45: #{tpu_custom_call.1} parent=5 // pred_check
        _
      $region46: #{tpu_custom_call.1} parent=5 // pred_check_branch
        %317 = sbr.rel (%p314) target = $region48
      $region47: #{tpu_custom_call.1} parent=5 // pred_region
        %s318 = ssub.s32 %s22, 1
        %s319 = sand.u32 %s49, 1
        %s320 = scalar_lea.sflag [#allocation3], %s319
        %s321 = sand.u32 %s49, 1
        %s322 = smul.addr %s321, 16
        %s323 = scalar_lea.vmem [#allocation2], %s322
        // Predicated region
        $region49: #{tpu_custom_call.1} parent=47 // pred_check
          %p324 = pneg %p62
        $region50: #{tpu_custom_call.1} parent=47 // pred_check_branch
          %326 = sbr.rel (%p324) target = $region52
        $region51: #{tpu_custom_call.1} parent=47 // pred_region
          %327 = dma.done %s320, 256
        $region52: #{tpu_custom_call.1} parent=47 // pred_fallthru
          _
        %s328 = sand.u32 %s27, 1
        %s329 = scalar_lea.sflag [#allocation6], %s328
        %s330 = sand.u32 %s79, 1
        %s331 = smul.addr %s330, 16
        %s332 = scalar_lea.vmem [#allocation5], %s331
        // Predicated region
        $region53: #{tpu_custom_call.1} parent=47 // pred_check
          %p333 = pneg %p92
        $region54: #{tpu_custom_call.1} parent=47 // pred_check_branch
          %335 = sbr.rel (%p333) target = $region56
        $region55: #{tpu_custom_call.1} parent=47 // pred_region
          %336 = dma.done %s329, 256
        $region56: #{tpu_custom_call.1} parent=47 // pred_fallthru
          _
        // Predicated region
        $region57: #{tpu_custom_call.1} parent=47 // pred_check
          %p337 = pneg %p197
        $region58: #{tpu_custom_call.1} parent=47 // pred_check_branch
          %339 = sbr.rel (%p337) target = $region60
        $region59: #{tpu_custom_call.1} parent=47 // pred_region
          %340 = dma.done [#allocation6], 8192
        $region60: #{tpu_custom_call.1} parent=47 // pred_fallthru
          _
        %s341 = sand.u32 %s49, 1
        %s342 = scalar_lea.sflag [#allocation3], %s341
        %s343 = sand.u32 %s49, 1
        %s344 = smul.addr %s343, 16
        %s345 = scalar_lea.vmem [#allocation2], %s344
        %p346 = pneg %p62
        %p347 = pneg %p59
        %s348 = sand.u32 %s27, 1
        %s349 = scalar_lea.sflag [#allocation6], %s348
        %s350 = sand.u32 %s79, 1
        %s351 = smul.addr %s350, 16
        %s352 = scalar_lea.vmem [#allocation5], %s351
        %p353 = pneg %p92
        %p354 = pneg %p89
        %p355 = pneg %p113
        %p356 = pneg %p110
        %p357 = pneg %p134
        %p358 = pneg %p131
        %p359 = pneg %p155
        %p360 = pneg %p152
        %p361 = pneg %p176
        %p362 = pneg %p173
        %p363 = pneg %p197
        %p364 = pneg %p194
        %p365 = pneg %p225
        %p366 = pneg %p222
        %s367 = sand.u32 %s212, 1
        %s368 = scalar_lea.sflag [#allocation4], %s367
        %s369 = sand.u32 %s212, 1
        %s370 = smul.addr %s369, 32
        %s371 = scalar_lea.vmem [#allocation8], %s370
        %s372 = smul.u32 4, %s32
        %s373 = sadd.s32 %s32, 1
        %s374 = smul.u32 4, %s373
        %s375 = smul.u32 2, %s32
        %v377 = vld [vmem:[%s323] sm:$0xff]
        %v378 = vld [vmem:[%s323 + $0x8] sm:$0xff]
        %v379 = vld [vmem:[%s332] sm:$0xf]
        %v382 = vunpack.c.l.b16 %v377
        %v383 = vunpack.c.h.b16 %v377
        %v384 = vunpack.c.l.b16 %v378
        %v385 = vunpack.c.h.b16 %v378
        %v386 = vpack.c.b16 %v382, %v382
        %v387 = vpack.c.b16 %v383, %v383
        %v388 = vpack.c.b16 %v384, %v384
        %v389 = vpack.c.b16 %v385, %v385
        %v391 = vrot.slane %v386, 4
        %v392 = vrot.slane %v387, 4
        %v393 = vrot.slane %v388, 4
        %v394 = vrot.slane %v389, 4
        %v395 = vrot.slane %v379, 4
        %396 = vrot.lane.b32.xlu0 %v391, 127
        %v397 = vpop.permute.xlu0 %396
        %398 = vrot.lane.b32.xlu0 %v392, 127
        %v399 = vpop.permute.xlu0 %398
        %400 = vrot.lane.b32.xlu0 %v393, 127
        %v401 = vpop.permute.xlu0 %400
        %402 = vrot.lane.b32.xlu0 %v394, 127
        %v403 = vpop.permute.xlu0 %402
        %404 = vrot.lane.b32.xlu0 %v395, 127
        %v405 = vpop.permute.xlu0 %404
        %vm406 = vcmask 1039360
        %v407 = vsel %vm406, %v397, %v399
        %v408 = vsel %vm406, %v399, %v401
        %v409 = vsel %vm406, %v401, %v403
        %v410 = vsel %vm406, %v403, %v405
        %411 = vrot.lane.b32.xlu0 %v386, 126
        %v412 = vpop.permute.xlu0 %411
        %413 = vrot.lane.b32.xlu0 %v387, 126
        %v414 = vpop.permute.xlu0 %413
        %415 = vrot.lane.b32.xlu0 %v388, 126
        %v416 = vpop.permute.xlu0 %415
        %417 = vrot.lane.b32.xlu0 %v389, 126
        %v418 = vpop.permute.xlu0 %417
        %419 = vrot.lane.b32.xlu0 %v379, 126
        %v420 = vpop.permute.xlu0 %419
        %vm421 = vcmask 1031168
        %v422 = vsel %vm421, %v412, %v414
        %v423 = vsel %vm421, %v414, %v416
        %v424 = vsel %vm421, %v416, %v418
        %v425 = vsel %vm421, %v418, %v420
        %426 = vrot.lane.b32.xlu0 %v391, 3
        %v427 = vpop.permute.xlu0 %426
        %428 = vrot.lane.b32.xlu0 %v392, 3
        %v429 = vpop.permute.xlu0 %428
        %430 = vrot.lane.b32.xlu0 %v393, 3
        %v431 = vpop.permute.xlu0 %430
        %432 = vrot.lane.b32.xlu0 %v394, 3
        %v433 = vpop.permute.xlu0 %432
        %434 = vrot.lane.b32.xlu0 %v395, 3
        %v435 = vpop.permute.xlu0 %434
        %vm436 = vcmask 23552
        %v437 = vsel %vm436, %v427, %v429
        %v438 = vsel %vm436, %v429, %v431
        %v439 = vsel %vm436, %v431, %v433
        %v440 = vsel %vm436, %v433, %v435
        %441 = vrot.lane.b32.xlu0 %v386, 1
        %v442 = vpop.permute.xlu0 %441
        %443 = vrot.lane.b32.xlu0 %v387, 1
        %v444 = vpop.permute.xlu0 %443
        %445 = vrot.lane.b32.xlu0 %v388, 1
        %v446 = vpop.permute.xlu0 %445
        %447 = vrot.lane.b32.xlu0 %v389, 1
        %v448 = vpop.permute.xlu0 %447
        %449 = vrot.lane.b32.xlu0 %v379, 1
        %v450 = vpop.permute.xlu0 %449
        %vm451 = vcmask 7168
        %v452 = vsel %vm451, %v442, %v444
        %v453 = vsel %vm451, %v444, %v446
        %v454 = vsel %vm451, %v446, %v448
        %v455 = vsel %vm451, %v448, %v450
        %456 = vrot.lane.b32.xlu0 %v386, 125
        %v457 = vpop.permute.xlu0 %456
        %458 = vrot.lane.b32.xlu0 %v387, 125
        %v459 = vpop.permute.xlu0 %458
        %460 = vrot.lane.b32.xlu0 %v388, 125
        %v461 = vpop.permute.xlu0 %460
        %462 = vrot.lane.b32.xlu0 %v389, 125
        %v463 = vpop.permute.xlu0 %462
        %464 = vrot.lane.b32.xlu0 %v379, 125
        %v465 = vpop.permute.xlu0 %464
        %vm466 = vcmask 1022976
        %v467 = vsel %vm466, %v457, %v459
        %v468 = vsel %vm466, %v459, %v461
        %v469 = vsel %vm466, %v461, %v463
        %v470 = vsel %vm466, %v463, %v465
        %471 = vrot.lane.b32.xlu0 %v391, 123
        %v472 = vpop.permute.xlu0 %471
        %473 = vrot.lane.b32.xlu0 %v392, 123
        %v474 = vpop.permute.xlu0 %473
        %475 = vrot.lane.b32.xlu0 %v393, 123
        %v476 = vpop.permute.xlu0 %475
        %477 = vrot.lane.b32.xlu0 %v394, 123
        %v478 = vpop.permute.xlu0 %477
        %479 = vrot.lane.b32.xlu0 %v395, 123
        %v480 = vpop.permute.xlu0 %479
        %vm481 = vcmask 1006592
        %v482 = vsel %vm481, %v472, %v474
        %v483 = vsel %vm481, %v474, %v476
        %v484 = vsel %vm481, %v476, %v478
        %v485 = vsel %vm481, %v478, %v480
        %vm486 = vcmask 1043456
        %v489 = vsel %vm486, %v386, %v407
        %v492 = vsel %vm486, %v387, %v408
        %v495 = vsel %vm486, %v388, %v409
        %v498 = vsel %vm486, %v389, %v410
        %v501 = vsel %vm486, %v379, %v405
        %v504 = vsel %vm486, %v422, %v427
        %v507 = vsel %vm486, %v423, %v437
        %v510 = vsel %vm486, %v424, %v438
        %v513 = vsel %vm486, %v425, %v439
        %v516 = vsel %vm486, %v420, %v440
        %v518 = vsel %vm486, %v442, %v407
        %v520 = vsel %vm486, %v452, %v408
        %v522 = vsel %vm486, %v453, %v409
        %v524 = vsel %vm486, %v454, %v410
        %v526 = vsel %vm486, %v455, %v405
        %v529 = vsel %vm486, %v467, %v482
        %v532 = vsel %vm486, %v468, %v483
        %v535 = vsel %vm486, %v469, %v484
        %v538 = vsel %vm486, %v470, %v485
        %v541 = vsel %vm486, %v465, %v480
        %v542 = vld [vmem:[%s2] sm:$0xf]
        %v543 = vld [vmem:[%s2 + $0x4] sm:$0xf]
        %v544 = vld [vmem:[%s2 + $0x8] sm:$0xf]
        %v545 = vld [vmem:[%s2 + $0xc] sm:$0xf]
        %v546 = vld [vmem:[%s3] sm:$0xff]
        %v547 = vld [vmem:[%s3 + $0x8] sm:$0xff]
        %v548 = vld [vmem:[%s3 + $0x10] sm:$0xff]
        %v549 = vld [vmem:[%s3 + $0x18] sm:$0xff]
        %551 = vset.pattern.permute.xlu0 0
        %552 = vperm.xlu0 %551, %v546
        %v553 = vpop.permute.xlu0 %552
        %556 = vset.pattern.permute.xlu0 0
        %557 = vperm.xlu0 %556, %v547
        %v558 = vpop.permute.xlu0 %557
        %561 = vset.pattern.permute.xlu0 0
        %562 = vperm.xlu0 %561, %v548
        %v563 = vpop.permute.xlu0 %562
        %566 = vset.pattern.permute.xlu0 0
        %567 = vperm.xlu0 %566, %v549
        %v568 = vpop.permute.xlu0 %567
        %v574 = vunpack.c.l.b16 %v542
        %v575 = vunpack.c.l.b16 %v543
        %v576 = vunpack.c.l.b16 %v544
        %v577 = vunpack.c.l.b16 %v545
        %v578 = vpack.c.b16 %v575, %v574
        %v579 = vpack.c.b16 %v577, %v576
        %600 = vrot.lane.b32.xlu0 %v489, 125
        %v601 = vpop.permute.xlu0 %600
        %602 = vrot.lane.b32.xlu0 %v492, 125
        %v603 = vpop.permute.xlu0 %602
        %604 = vrot.lane.b32.xlu0 %v495, 125
        %v605 = vpop.permute.xlu0 %604
        %606 = vrot.lane.b32.xlu0 %v498, 125
        %v607 = vpop.permute.xlu0 %606
        %608 = vrot.lane.b32.xlu0 %v501, 125
        %v609 = vpop.permute.xlu0 %608
        %610 = vrot.lane.b32.xlu0 %v504, 125
        %v611 = vpop.permute.xlu0 %610
        %612 = vrot.lane.b32.xlu0 %v507, 125
        %v613 = vpop.permute.xlu0 %612
        %614 = vrot.lane.b32.xlu0 %v510, 125
        %v615 = vpop.permute.xlu0 %614
        %616 = vrot.lane.b32.xlu0 %v513, 125
        %v617 = vpop.permute.xlu0 %616
        %618 = vrot.lane.b32.xlu0 %v516, 125
        %v619 = vpop.permute.xlu0 %618
        %620 = vrot.lane.b32.xlu0 %v518, 125
        %v621 = vpop.permute.xlu0 %620
        %622 = vrot.lane.b32.xlu0 %v520, 125
        %v623 = vpop.permute.xlu0 %622
        %624 = vrot.lane.b32.xlu0 %v522, 125
        %v625 = vpop.permute.xlu0 %624
        %626 = vrot.lane.b32.xlu0 %v524, 125
        %v627 = vpop.permute.xlu0 %626
        %628 = vrot.lane.b32.xlu0 %v526, 125
        %v629 = vpop.permute.xlu0 %628
        %630 = vrot.lane.b32.xlu0 %v529, 125
        %v631 = vpop.permute.xlu0 %630
        %632 = vrot.lane.b32.xlu0 %v532, 125
        %v633 = vpop.permute.xlu0 %632
        %634 = vrot.lane.b32.xlu0 %v535, 125
        %v635 = vpop.permute.xlu0 %634
        %636 = vrot.lane.b32.xlu0 %v538, 125
        %v637 = vpop.permute.xlu0 %636
        %638 = vrot.lane.b32.xlu0 %v541, 125
        %v639 = vpop.permute.xlu0 %638
        %v640 = vsel %vm466, %v601, %v603
        %v641 = vsel %vm466, %v603, %v605
        %v642 = vsel %vm466, %v605, %v607
        %v643 = vsel %vm466, %v607, %v609
        %v644 = vsel %vm466, %v611, %v613
        %v645 = vsel %vm466, %v613, %v615
        %v646 = vsel %vm466, %v615, %v617
        %v647 = vsel %vm466, %v617, %v619
        %v648 = vsel %vm466, %v621, %v623
        %v649 = vsel %vm466, %v623, %v625
        %v650 = vsel %vm466, %v625, %v627
        %v651 = vsel %vm466, %v627, %v629
        %v652 = vsel %vm466, %v631, %v633
        %v653 = vsel %vm466, %v633, %v635
        %v654 = vsel %vm466, %v635, %v637
        %v655 = vsel %vm466, %v637, %v639
        %vm676 = vcmask 523264
        %v678 = vsel %vm676, %v578, 0
        %v681 = vsel %vm676, %v579, 0
        %683 = vmatprep.subr.bf16.mxu0 %v641
        %684 = vmatpush1.bf16.msra.mxu0 %v640
        %685 = vmatprep.subr.bf16.mxu0 %v645
        %686 = vmatpush1.bf16.msra.mxu0 %v644
        %687 = vmatprep.subr.bf16.mxu0 %v649
        %688 = vmatpush1.bf16.msra.mxu0 %v648
        %689 = vmatprep.subr.bf16.mxu0 %v653
        %690 = vmatpush1.bf16.msra.mxu0 %v652
        %691 = vmatprep.subr.bf16.mxu0 0
        %692 = vmatpush1.bf16.msra.mxu0 0
        %693 = vmatprep.subr.bf16.mxu0 0
        %694 = vmatpush1.bf16.msra.mxu0 0
        %695 = vmatprep.subr.bf16.mxu0 0
        %696 = vmatpush1.bf16.msra.mxu0 0
        %697 = vmatprep.subr.bf16.mxu0 0
        %698 = vmatpush1.bf16.msra.mxu0 0
        %699 = vmatprep.subr.bf16.mxu0 0
        %700 = vmatpush1.bf16.msra.mxu0 0
        %701 = vmatprep.subr.bf16.mxu0 0
        %702 = vmatpush1.bf16.msra.mxu0 0
        %703 = vmatprep.subr.bf16.mxu0 0
        %704 = vmatpush1.bf16.msra.mxu0 0
        %705 = vmatprep.subr.bf16.mxu0 0
        %706 = vmatpush1.bf16.msra.mxu0 0
        %707 = vmatprep.subr.bf16.mxu0 0
        %708 = vmatpush1.bf16.msra.mxu0 0
        %709 = vmatprep.subr.bf16.mxu0 0
        %710 = vmatpush1.bf16.msra.mxu0 0
        %711 = vmatprep.subr.bf16.mxu0 0
        %712 = vmatpush1.bf16.msra.mxu0 0
        %713 = vmatprep.subr.bf16.mxu0 0
        %714 = vmatpush1.bf16.msra.mxu0 0
        %715 = vmatprep.mubr.bf16.mxu0 0
        %716 = vmatmul.mubr.bf16.gmra.mrb[0].mxu0 %v678
        %v717 = vpop.f32.mrb[0].mxu0
        %v718 = vadd.f32 %v553, %v717
        %v719 = vpop.f32.mrb[0].mxu0
        %v720 = vadd.f32 %v553, %v719
        %v721 = vpop.f32.mrb[0].mxu0
        %v722 = vadd.f32 %v558, %v721
        %v723 = vpop.f32.mrb[0].mxu0
        %v724 = vadd.f32 %v558, %v723
        %725 = vmatprep.mubr.bf16.mxu0 0
        %726 = vmatmul.mubr.bf16.gmra.mrb[0].mxu0 %v681
        %v727 = vpop.f32.mrb[0].mxu0
        %v728 = vadd.f32 %v563, %v727
        %v729 = vpop.f32.mrb[0].mxu0
        %v730 = vadd.f32 %v563, %v729
        %v731 = vpop.f32.mrb[0].mxu0
        %v732 = vadd.f32 %v568, %v731
        %v733 = vpop.f32.mrb[0].mxu0
        %v734 = vadd.f32 %v568, %v733
        %735 = vdwg.mxu0
        %736 = vmatprep.subr.bf16.mxu0 %v643
        %737 = vmatpush1.bf16.msra.mxu0 %v642
        %738 = vmatprep.subr.bf16.mxu0 %v647
        %739 = vmatpush1.bf16.msra.mxu0 %v646
        %740 = vmatprep.subr.bf16.mxu0 %v651
        %741 = vmatpush1.bf16.msra.mxu0 %v650
        %742 = vmatprep.subr.bf16.mxu0 %v655
        %743 = vmatpush1.bf16.msra.mxu0 %v654
        %744 = vmatprep.subr.bf16.mxu0 0
        %745 = vmatpush1.bf16.msra.mxu0 0
        %746 = vmatprep.subr.bf16.mxu0 0
        %747 = vmatpush1.bf16.msra.mxu0 0
        %748 = vmatprep.subr.bf16.mxu0 0
        %749 = vmatpush1.bf16.msra.mxu0 0
        %750 = vmatprep.subr.bf16.mxu0 0
        %751 = vmatpush1.bf16.msra.mxu0 0
        %752 = vmatprep.subr.bf16.mxu0 0
        %753 = vmatpush1.bf16.msra.mxu0 0
        %754 = vmatprep.subr.bf16.mxu0 0
        %755 = vmatpush1.bf16.msra.mxu0 0
        %756 = vmatprep.subr.bf16.mxu0 0
        %757 = vmatpush1.bf16.msra.mxu0 0
        %758 = vmatprep.subr.bf16.mxu0 0
        %759 = vmatpush1.bf16.msra.mxu0 0
        %760 = vmatprep.subr.bf16.mxu0 0
        %761 = vmatpush1.bf16.msra.mxu0 0
        %762 = vmatprep.subr.bf16.mxu0 0
        %763 = vmatpush1.bf16.msra.mxu0 0
        %764 = vmatprep.subr.bf16.mxu0 0
        %765 = vmatpush1.bf16.msra.mxu0 0
        %766 = vmatprep.subr.bf16.mxu0 0
        %767 = vmatpush1.bf16.msra.mxu0 0
        %768 = vmatprep.mubr.bf16.mxu0 0
        %769 = vmatmul.mubr.bf16.gmra.mrb[0].mxu0 %v678
        %v770 = vpop.f32.mrb[0].mxu0
        %v771 = vadd.f32 %v553, %v770
        %v772 = vpop.f32.mrb[0].mxu0
        %v773 = vadd.f32 %v553, %v772
        %v774 = vpop.f32.mrb[0].mxu0
        %v775 = vadd.f32 %v558, %v774
        %v776 = vpop.f32.mrb[0].mxu0
        %v777 = vadd.f32 %v558, %v776
        %778 = vmatprep.mubr.bf16.mxu0 0
        %779 = vmatmul.mubr.bf16.gmra.mrb[0].mxu0 %v681
        %v780 = vpop.f32.mrb[0].mxu0
        %v781 = vadd.f32 %v563, %v780
        %v782 = vpop.f32.mrb[0].mxu0
        %v783 = vadd.f32 %v563, %v782
        %v784 = vpop.f32.mrb[0].mxu0
        %v785 = vadd.f32 %v568, %v784
        %v786 = vpop.f32.mrb[0].mxu0
        %v787 = vadd.f32 %v568, %v786
        %788 = vdwg.mxu0
        %789 = vmatprep.subr.bf16.mxu0 0
        %790 = vmatpush1.bf16.msra.mxu0 %v609
        %791 = vmatprep.subr.bf16.mxu0 0
        %792 = vmatpush1.bf16.msra.mxu0 %v619
        %793 = vmatprep.subr.bf16.mxu0 0
        %794 = vmatpush1.bf16.msra.mxu0 %v629
        %795 = vmatprep.subr.bf16.mxu0 0
        %796 = vmatpush1.bf16.msra.mxu0 %v639
        %797 = vmatprep.subr.bf16.mxu0 0
        %798 = vmatpush1.bf16.msra.mxu0 0
        %799 = vmatprep.subr.bf16.mxu0 0
        %800 = vmatpush1.bf16.msra.mxu0 0
        %801 = vmatprep.subr.bf16.mxu0 0
        %802 = vmatpush1.bf16.msra.mxu0 0
        %803 = vmatprep.subr.bf16.mxu0 0
        %804 = vmatpush1.bf16.msra.mxu0 0
        %805 = vmatprep.subr.bf16.mxu0 0
        %806 = vmatpush1.bf16.msra.mxu0 0
        %807 = vmatprep.subr.bf16.mxu0 0
        %808 = vmatpush1.bf16.msra.mxu0 0
        %809 = vmatprep.subr.bf16.mxu0 0
        %810 = vmatpush1.bf16.msra.mxu0 0
        %811 = vmatprep.subr.bf16.mxu0 0
        %812 = vmatpush1.bf16.msra.mxu0 0
        %813 = vmatprep.subr.bf16.mxu0 0
        %814 = vmatpush1.bf16.msra.mxu0 0
        %815 = vmatprep.subr.bf16.mxu0 0
        %816 = vmatpush1.bf16.msra.mxu0 0
        %817 = vmatprep.subr.bf16.mxu0 0
        %818 = vmatpush1.bf16.msra.mxu0 0
        %819 = vmatprep.subr.bf16.mxu0 0
        %820 = vmatpush1.bf16.msra.mxu0 0
        %821 = vmatprep.mubr.bf16.mxu0 0
        %822 = vmatmul.mubr.bf16.gmra.mrb[0].mxu0 %v678
        %v823 = vpop.f32.mrb[0].mxu0
        %v824 = vadd.f32 %v553, %v823
        %v825 = vpop.f32.mrb[0].mxu0
        %v826 = vpop.f32.mrb[0].mxu0
        %v827 = vadd.f32 %v558, %v826
        %v828 = vpop.f32.mrb[0].mxu0
        %829 = vmatprep.mubr.bf16.mxu0 0
        %830 = vmatmul.mubr.bf16.gmra.mrb[0].mxu0 %v681
        %v831 = vpop.f32.mrb[0].mxu0
        %v832 = vadd.f32 %v563, %v831
        %v833 = vpop.f32.mrb[0].mxu0
        %v834 = vpop.f32.mrb[0].mxu0
        %v835 = vadd.f32 %v568, %v834
        %v836 = vpop.f32.mrb[0].mxu0
        %837 = vdwg.mxu0
        %vm838 = vcmp.gt.f32.partialorder %v718, 0.0
        %vm839 = vcmp.gt.f32.partialorder %v720, 0.0
        %vm840 = vcmp.gt.f32.partialorder %v771, 0.0
        %vm841 = vcmp.gt.f32.partialorder %v773, 0.0
        %vm842 = vcmp.gt.f32.partialorder %v824, 0.0
        %vm843 = vcmp.gt.f32.partialorder %v722, 0.0
        %vm844 = vcmp.gt.f32.partialorder %v724, 0.0
        %vm845 = vcmp.gt.f32.partialorder %v775, 0.0
        %vm846 = vcmp.gt.f32.partialorder %v777, 0.0
        %vm847 = vcmp.gt.f32.partialorder %v827, 0.0
        %vm848 = vcmp.gt.f32.partialorder %v728, 0.0
        %vm849 = vcmp.gt.f32.partialorder %v730, 0.0
        %vm850 = vcmp.gt.f32.partialorder %v781, 0.0
        %vm851 = vcmp.gt.f32.partialorder %v783, 0.0
        %vm852 = vcmp.gt.f32.partialorder %v832, 0.0
        %vm853 = vcmp.gt.f32.partialorder %v732, 0.0
        %vm854 = vcmp.gt.f32.partialorder %v734, 0.0
        %vm855 = vcmp.gt.f32.partialorder %v785, 0.0
        %vm856 = vcmp.gt.f32.partialorder %v787, 0.0
        %vm857 = vcmp.gt.f32.partialorder %v835, 0.0
        %v858 = vmul.f32 %v718, 0.2
        %v859 = vmul.f32 %v720, 0.2
        %v860 = vmul.f32 %v771, 0.2
        %v861 = vmul.f32 %v773, 0.2
        %v862 = vmul.f32 %v824, 0.2
        %v863 = vmul.f32 %v722, 0.2
        %v864 = vmul.f32 %v724, 0.2
        %v865 = vmul.f32 %v775, 0.2
        %v866 = vmul.f32 %v777, 0.2
        %v867 = vmul.f32 %v827, 0.2
        %v868 = vmul.f32 %v728, 0.2
        %v869 = vmul.f32 %v730, 0.2
        %v870 = vmul.f32 %v781, 0.2
        %v871 = vmul.f32 %v783, 0.2
        %v872 = vmul.f32 %v832, 0.2
        %v873 = vmul.f32 %v732, 0.2
        %v874 = vmul.f32 %v734, 0.2
        %v875 = vmul.f32 %v785, 0.2
        %v876 = vmul.f32 %v787, 0.2
        %v877 = vmul.f32 %v835, 0.2
        %v878 = vsel %vm838, %v718, %v858
        %v879 = vsel %vm839, %v720, %v859
        %v880 = vsel %vm840, %v771, %v860
        %v881 = vsel %vm841, %v773, %v861
        %v882 = vsel %vm842, %v824, %v862
        %v883 = vsel %vm843, %v722, %v863
        %v884 = vsel %vm844, %v724, %v864
        %v885 = vsel %vm845, %v775, %v865
        %v886 = vsel %vm846, %v777, %v866
        %v887 = vsel %vm847, %v827, %v867
        %v888 = vsel %vm848, %v728, %v868
        %v889 = vsel %vm849, %v730, %v869
        %v890 = vsel %vm850, %v781, %v870
        %v891 = vsel %vm851, %v783, %v871
        %v892 = vsel %vm852, %v832, %v872
        %v893 = vsel %vm853, %v732, %v873
        %v894 = vsel %vm854, %v734, %v874
        %v895 = vsel %vm855, %v785, %v875
        %v896 = vsel %vm856, %v787, %v876
        %v897 = vsel %vm857, %v835, %v877
        %v898 = vadd.f32 %v878, %v888
        %v899 = vadd.f32 %v879, %v889
        %v900 = vadd.f32 %v880, %v890
        %v901 = vadd.f32 %v881, %v891
        %v902 = vadd.f32 %v882, %v892
        %v903 = vadd.f32 %v883, %v893
        %v904 = vadd.f32 %v884, %v894
        %v905 = vadd.f32 %v885, %v895
        %v906 = vadd.f32 %v886, %v896
        %v907 = vadd.f32 %v887, %v897
        %v908 = vlaneseq
        %v909 = vand.u32 %v908, 127
        %v910 = vadd.s32 %v909, 128
        %v911 = vadd.s32 %v909, 256
        %v912 = vadd.s32 %v909, 384
        %v913 = vadd.s32 %v909, 512
        %s914 = smul.u32 %s32, 512
        %s915 = ssub.s32 %s914, 4
        %v916 = vstv %s915
        %v917 = vadd.s32 %v909, %v916
        %v918 = vadd.s32 %v910, %v916
        %v919 = vadd.s32 %v911, %v916
        %v920 = vadd.s32 %v912, %v916
        %v921 = vadd.s32 %v913, %v916
        %vm922 = vcmp.ge.s32.totalorder %v917, 0
        %vm923 = vcmp.ge.s32.totalorder %v918, 0
        %vm924 = vcmp.ge.s32.totalorder %v919, 0
        %vm925 = vcmp.ge.s32.totalorder %v920, 0
        %vm926 = vcmp.ge.s32.totalorder %v921, 0
        %vm927 = vcmp.lt.s32.totalorder %v917, 960
        %vm928 = vcmp.lt.s32.totalorder %v918, 960
        %vm929 = vcmp.lt.s32.totalorder %v919, 960
        %vm930 = vcmp.lt.s32.totalorder %v920, 960
        %vm931 = vcmp.lt.s32.totalorder %v921, 960
        %vm932 = vmand %vm922, %vm927
        %vm933 = vmand %vm923, %vm928
        %vm934 = vmand %vm924, %vm929
        %vm935 = vmand %vm925, %vm930
        %vm936 = vmand %vm926, %vm931
        %v937 = vsel %vm932, %v898, 0.0
        %v938 = vsel %vm933, %v899, 0.0
        %v939 = vsel %vm934, %v900, 0.0
        %v940 = vsel %vm935, %v901, 0.0
        %v941 = vsel %vm936, %v902, 0.0
        %v942 = vsel %vm932, %v903, 0.0
        %v943 = vsel %vm933, %v904, 0.0
        %v944 = vsel %vm934, %v905, 0.0
        %v945 = vsel %vm935, %v906, 0.0
        %v946 = vsel %vm936, %v907, 0.0
        %v947 = vld [vmem:[%s4] sm:$0xf]
        %v948 = vld [vmem:[%s4 + $0x4] sm:$0xf]
        %v949 = vld [vmem:[%s4 + $0x8] sm:$0xf]
        %v950 = vld [vmem:[%s4 + $0xc] sm:$0xf]
        %v951 = vld [vmem:[%s4 + $0x10] sm:$0xf]
        %v952 = vld [vmem:[%s4 + $0x14] sm:$0xf]
        %v953 = vpack.c.bf16 %v942, %v937
        %v954 = vpack.c.bf16 %v943, %v938
        %v955 = vpack.c.bf16 %v944, %v939
        %v956 = vpack.c.bf16 %v945, %v940
        %v957 = vpack.c.bf16 %v946, %v941
        %v964 = vunpack.c.l.b16 %v947
        %v965 = vunpack.c.l.b16 %v948
        %v966 = vunpack.c.l.b16 %v949
        %v967 = vunpack.c.l.b16 %v950
        %v968 = vunpack.c.l.b16 %v951
        %v969 = vunpack.c.l.b16 %v952
        %v970 = vpack.c.b16 %v965, %v964
        %v971 = vpack.c.b16 %v967, %v966
        %v972 = vpack.c.b16 %v969, %v968
        %vm973 = vcmask 130048
        %v975 = vsel %vm973, %v970, 0
        %v978 = vsel %vm973, %v971, 0
        %v981 = vsel %vm973, %v972, 0
        %983 = vmatprep.subr.bf16.mxu0 %v954
        %984 = vmatpush1.bf16.msra.mxu0 %v953
        %985 = vmatprep.subr.bf16.mxu0 0
        %986 = vmatpush1.bf16.msra.mxu0 0
        %987 = vmatprep.subr.bf16.mxu0 0
        %988 = vmatpush1.bf16.msra.mxu0 0
        %989 = vmatprep.subr.bf16.mxu0 0
        %990 = vmatpush1.bf16.msra.mxu0 0
        %991 = vmatprep.subr.bf16.mxu0 0
        %992 = vmatpush1.bf16.msra.mxu0 0
        %993 = vmatprep.subr.bf16.mxu0 0
        %994 = vmatpush1.bf16.msra.mxu0 0
        %995 = vmatprep.subr.bf16.mxu0 0
        %996 = vmatpush1.bf16.msra.mxu0 0
        %997 = vmatprep.subr.bf16.mxu0 0
        %998 = vmatpush1.bf16.msra.mxu0 0
        %999 = vmatprep.subr.bf16.mxu0 0
        %1000 = vmatpush1.bf16.msra.mxu0 0
        %1001 = vmatprep.subr.bf16.mxu0 0
        %1002 = vmatpush1.bf16.msra.mxu0 0
        %1003 = vmatprep.subr.bf16.mxu0 0
        %1004 = vmatpush1.bf16.msra.mxu0 0
        %1005 = vmatprep.subr.bf16.mxu0 0
        %1006 = vmatpush1.bf16.msra.mxu0 0
        %1007 = vmatprep.subr.bf16.mxu0 0
        %1008 = vmatpush1.bf16.msra.mxu0 0
        %1009 = vmatprep.subr.bf16.mxu0 0
        %1010 = vmatpush1.bf16.msra.mxu0 0
        %1011 = vmatprep.subr.bf16.mxu0 0
        %1012 = vmatpush1.bf16.msra.mxu0 0
        %1013 = vmatprep.subr.bf16.mxu0 0
        %1014 = vmatpush1.bf16.msra.mxu0 0
        %1015 = vmatprep.mubr.bf16.mxu0 0
        %1016 = vmatmul.mubr.bf16.gmra.mrb[0].mxu0 %v975
        %v1017 = vpop.f32.mrb[0].mxu0
        %v1018 = vadd.f32 0.0, %v1017
        %v1019 = vpop.f32.mrb[0].mxu0
        %v1020 = vadd.f32 0.0, %v1019
        %v1021 = vpop.f32.mrb[0].mxu0
        %v1022 = vadd.f32 0.0, %v1021
        %v1023 = vpop.f32.mrb[0].mxu0
        %v1024 = vadd.f32 0.0, %v1023
        %1025 = vmatprep.mubr.bf16.mxu0 0
        %1026 = vmatmul.mubr.bf16.gmra.mrb[0].mxu0 %v978
        %v1027 = vpop.f32.mrb[0].mxu0
        %v1028 = vadd.f32 0.0, %v1027
        %v1029 = vpop.f32.mrb[0].mxu0
        %v1030 = vadd.f32 0.0, %v1029
        %v1031 = vpop.f32.mrb[0].mxu0
        %v1032 = vadd.f32 0.0, %v1031
        %v1033 = vpop.f32.mrb[0].mxu0
        %v1034 = vadd.f32 0.0, %v1033
        %1035 = vmatprep.mubr.bf16.mxu0 0
        %1036 = vmatmul.mubr.bf16.gmra.mrb[0].mxu0 %v981
        %v1037 = vpop.f32.mrb[0].mxu0
        %v1038 = vadd.f32 0.0, %v1037
        %v1039 = vpop.f32.mrb[0].mxu0
        %v1040 = vadd.f32 0.0, %v1039
        %v1041 = vpop.f32.mrb[0].mxu0
        %v1042 = vadd.f32 0.0, %v1041
        %v1043 = vpop.f32.mrb[0].mxu0
        %v1044 = vadd.f32 0.0, %v1043
        %1045 = vdwg.mxu0
        %1046 = vmatprep.subr.bf16.mxu0 %v956
        %1047 = vmatpush1.bf16.msra.mxu0 %v955
        %1048 = vmatprep.subr.bf16.mxu0 0
        %1049 = vmatpush1.bf16.msra.mxu0 0
        %1050 = vmatprep.subr.bf16.mxu0 0
        %1051 = vmatpush1.bf16.msra.mxu0 0
        %1052 = vmatprep.subr.bf16.mxu0 0
        %1053 = vmatpush1.bf16.msra.mxu0 0
        %1054 = vmatprep.subr.bf16.mxu0 0
        %1055 = vmatpush1.bf16.msra.mxu0 0
        %1056 = vmatprep.subr.bf16.mxu0 0
        %1057 = vmatpush1.bf16.msra.mxu0 0
        %1058 = vmatprep.subr.bf16.mxu0 0
        %1059 = vmatpush1.bf16.msra.mxu0 0
        %1060 = vmatprep.subr.bf16.mxu0 0
        %1061 = vmatpush1.bf16.msra.mxu0 0
        %1062 = vmatprep.subr.bf16.mxu0 0
        %1063 = vmatpush1.bf16.msra.mxu0 0
        %1064 = vmatprep.subr.bf16.mxu0 0
        %1065 = vmatpush1.bf16.msra.mxu0 0
        %1066 = vmatprep.subr.bf16.mxu0 0
        %1067 = vmatpush1.bf16.msra.mxu0 0
        %1068 = vmatprep.subr.bf16.mxu0 0
        %1069 = vmatpush1.bf16.msra.mxu0 0
        %1070 = vmatprep.subr.bf16.mxu0 0
        %1071 = vmatpush1.bf16.msra.mxu0 0
        %1072 = vmatprep.subr.bf16.mxu0 0
        %1073 = vmatpush1.bf16.msra.mxu0 0
        %1074 = vmatprep.subr.bf16.mxu0 0
        %1075 = vmatpush1.bf16.msra.mxu0 0
        %1076 = vmatprep.subr.bf16.mxu0 0
        %1077 = vmatpush1.bf16.msra.mxu0 0
        %1078 = vmatprep.mubr.bf16.mxu0 0
        %1079 = vmatmul.mubr.bf16.gmra.mrb[0].mxu0 %v975
        %v1080 = vpop.f32.mrb[0].mxu0
        %v1081 = vadd.f32 0.0, %v1080
        %v1082 = vpop.f32.mrb[0].mxu0
        %v1083 = vadd.f32 0.0, %v1082
        %v1084 = vpop.f32.mrb[0].mxu0
        %v1085 = vadd.f32 0.0, %v1084
        %v1086 = vpop.f32.mrb[0].mxu0
        %v1087 = vadd.f32 0.0, %v1086
        %1088 = vmatprep.mubr.bf16.mxu0 0
        %1089 = vmatmul.mubr.bf16.gmra.mrb[0].mxu0 %v978
        %v1090 = vpop.f32.mrb[0].mxu0
        %v1091 = vadd.f32 0.0, %v1090
        %v1092 = vpop.f32.mrb[0].mxu0
        %v1093 = vadd.f32 0.0, %v1092
        %v1094 = vpop.f32.mrb[0].mxu0
        %v1095 = vadd.f32 0.0, %v1094
        %v1096 = vpop.f32.mrb[0].mxu0
        %v1097 = vadd.f32 0.0, %v1096
        %1098 = vmatprep.mubr.bf16.mxu0 0
        %1099 = vmatmul.mubr.bf16.gmra.mrb[0].mxu0 %v981
        %v1100 = vpop.f32.mrb[0].mxu0
        %v1101 = vadd.f32 0.0, %v1100
        %v1102 = vpop.f32.mrb[0].mxu0
        %v1103 = vadd.f32 0.0, %v1102
        %v1104 = vpop.f32.mrb[0].mxu0
        %v1105 = vadd.f32 0.0, %v1104
        %v1106 = vpop.f32.mrb[0].mxu0
        %v1107 = vadd.f32 0.0, %v1106
        %1108 = vdwg.mxu0
        %1109 = vmatprep.subr.bf16.mxu0 0
        %1110 = vmatpush1.bf16.msra.mxu0 %v957
        %1111 = vmatprep.subr.bf16.mxu0 0
        %1112 = vmatpush1.bf16.msra.mxu0 0
        %1113 = vmatprep.subr.bf16.mxu0 0
        %1114 = vmatpush1.bf16.msra.mxu0 0
        %1115 = vmatprep.subr.bf16.mxu0 0
        %1116 = vmatpush1.bf16.msra.mxu0 0
        %1117 = vmatprep.subr.bf16.mxu0 0
        %1118 = vmatpush1.bf16.msra.mxu0 0
        %1119 = vmatprep.subr.bf16.mxu0 0
        %1120 = vmatpush1.bf16.msra.mxu0 0
        %1121 = vmatprep.subr.bf16.mxu0 0
        %1122 = vmatpush1.bf16.msra.mxu0 0
        %1123 = vmatprep.subr.bf16.mxu0 0
        %1124 = vmatpush1.bf16.msra.mxu0 0
        %1125 = vmatprep.subr.bf16.mxu0 0
        %1126 = vmatpush1.bf16.msra.mxu0 0
        %1127 = vmatprep.subr.bf16.mxu0 0
        %1128 = vmatpush1.bf16.msra.mxu0 0
        %1129 = vmatprep.subr.bf16.mxu0 0
        %1130 = vmatpush1.bf16.msra.mxu0 0
        %1131 = vmatprep.subr.bf16.mxu0 0
        %1132 = vmatpush1.bf16.msra.mxu0 0
        %1133 = vmatprep.subr.bf16.mxu0 0
        %1134 = vmatpush1.bf16.msra.mxu0 0
        %1135 = vmatprep.subr.bf16.mxu0 0
        %1136 = vmatpush1.bf16.msra.mxu0 0
        %1137 = vmatprep.subr.bf16.mxu0 0
        %1138 = vmatpush1.bf16.msra.mxu0 0
        %1139 = vmatprep.subr.bf16.mxu0 0
        %1140 = vmatpush1.bf16.msra.mxu0 0
        %1141 = vmatprep.mubr.bf16.mxu0 0
        %1142 = vmatmul.mubr.bf16.gmra.mrb[0].mxu0 %v975
        %v1143 = vpop.f32.mrb[0].mxu0
        %v1144 = vpop.f32.mrb[0].mxu0
        %v1145 = vpop.f32.mrb[0].mxu0
        %v1146 = vpop.f32.mrb[0].mxu0
        %1147 = vmatprep.mubr.bf16.mxu0 0
        %1148 = vmatmul.mubr.bf16.gmra.mrb[0].mxu0 %v978
        %v1149 = vpop.f32.mrb[0].mxu0
        %v1150 = vpop.f32.mrb[0].mxu0
        %v1151 = vpop.f32.mrb[0].mxu0
        %v1152 = vpop.f32.mrb[0].mxu0
        %1153 = vmatprep.mubr.bf16.mxu0 0
        %1154 = vmatmul.mubr.bf16.gmra.mrb[0].mxu0 %v981
        %v1155 = vpop.f32.mrb[0].mxu0
        %v1156 = vadd.f32 0.0, %v1155
        %v1157 = vpop.f32.mrb[0].mxu0
        %v1158 = vpop.f32.mrb[0].mxu0
        %v1159 = vadd.f32 0.0, %v1158
        %v1160 = vpop.f32.mrb[0].mxu0
        %1161 = vdwg.mxu0
        %1170 = vrot.lane.b32.xlu0 %v1028, 127
        %v1171 = vpop.permute.xlu0 %1170
        %1172 = vrot.lane.b32.xlu0 %v1030, 127
        %v1173 = vpop.permute.xlu0 %1172
        %1174 = vrot.lane.b32.xlu0 %v1091, 127
        %v1175 = vpop.permute.xlu0 %1174
        %1176 = vrot.lane.b32.xlu0 %v1093, 127
        %v1177 = vpop.permute.xlu0 %1176
        %1178 = vrot.lane.b32.xlu0 %v1032, 127
        %v1179 = vpop.permute.xlu0 %1178
        %1180 = vrot.lane.b32.xlu0 %v1034, 127
        %v1181 = vpop.permute.xlu0 %1180
        %1182 = vrot.lane.b32.xlu0 %v1095, 127
        %v1183 = vpop.permute.xlu0 %1182
        %1184 = vrot.lane.b32.xlu0 %v1097, 127
        %v1185 = vpop.permute.xlu0 %1184
        %vm1186 = vcmask 1039360
        %v1187 = vsel %vm1186, %v1171, %v1173
        %v1188 = vsel %vm1186, %v1173, %v1175
        %v1189 = vsel %vm1186, %v1175, %v1177
        %v1190 = vsel %vm1186, %v1179, %v1181
        %v1191 = vsel %vm1186, %v1181, %v1183
        %v1192 = vsel %vm1186, %v1183, %v1185
        %v1201 = vadd.f32 %v1018, %v1187
        %v1202 = vadd.f32 %v1020, %v1188
        %v1203 = vadd.f32 %v1081, %v1189
        %v1204 = vadd.f32 %v1083, %v1177
        %v1205 = vadd.f32 %v1022, %v1190
        %v1206 = vadd.f32 %v1024, %v1191
        %v1207 = vadd.f32 %v1085, %v1192
        %v1208 = vadd.f32 %v1087, %v1185
        %1219 = vrot.lane.b32.xlu0 %v1038, 126
        %v1220 = vpop.permute.xlu0 %1219
        %1221 = vrot.lane.b32.xlu0 %v1040, 126
        %v1222 = vpop.permute.xlu0 %1221
        %1223 = vrot.lane.b32.xlu0 %v1101, 126
        %v1224 = vpop.permute.xlu0 %1223
        %1225 = vrot.lane.b32.xlu0 %v1103, 126
        %v1226 = vpop.permute.xlu0 %1225
        %1227 = vrot.lane.b32.xlu0 %v1156, 126
        %v1228 = vpop.permute.xlu0 %1227
        %1229 = vrot.lane.b32.xlu0 %v1042, 126
        %v1230 = vpop.permute.xlu0 %1229
        %1231 = vrot.lane.b32.xlu0 %v1044, 126
        %v1232 = vpop.permute.xlu0 %1231
        %1233 = vrot.lane.b32.xlu0 %v1105, 126
        %v1234 = vpop.permute.xlu0 %1233
        %1235 = vrot.lane.b32.xlu0 %v1107, 126
        %v1236 = vpop.permute.xlu0 %1235
        %1237 = vrot.lane.b32.xlu0 %v1159, 126
        %v1238 = vpop.permute.xlu0 %1237
        %vm1239 = vcmask 1031168
        %v1240 = vsel %vm1239, %v1220, %v1222
        %v1241 = vsel %vm1239, %v1222, %v1224
        %v1242 = vsel %vm1239, %v1224, %v1226
        %v1243 = vsel %vm1239, %v1226, %v1228
        %v1244 = vsel %vm1239, %v1230, %v1232
        %v1245 = vsel %vm1239, %v1232, %v1234
        %v1246 = vsel %vm1239, %v1234, %v1236
        %v1247 = vsel %vm1239, %v1236, %v1238
        %v1256 = vadd.f32 %v1201, %v1240
        %v1257 = vadd.f32 %v1202, %v1241
        %v1258 = vadd.f32 %v1203, %v1242
        %v1259 = vadd.f32 %v1204, %v1243
        %v1260 = vadd.f32 %v1205, %v1244
        %v1261 = vadd.f32 %v1206, %v1245
        %v1262 = vadd.f32 %v1207, %v1246
        %v1263 = vadd.f32 %v1208, %v1247
        %v1264 = vpack.c.bf16 %v1260, %v1256
        %v1265 = vpack.c.bf16 %v1261, %v1257
        %v1266 = vpack.c.bf16 %v1262, %v1258
        %v1267 = vpack.c.bf16 %v1263, %v1259
        %v1268 = vld [vmem:[#allocation7] sm:$0xff]
        %v1269 = vld [vmem:[#allocation7 + $0x8] sm:$0xff]
        %v1270 = vld [vmem:[#allocation7 + $0x10] sm:$0xff]
        %v1271 = vld [vmem:[#allocation7 + $0x18] sm:$0xff]
        %v1272 = vld [vmem:[#allocation7 + $0x20] sm:$0xff]
        %v1273 = vld [vmem:[#allocation7 + $0x28] sm:$0xff]
        %v1274 = vld [vmem:[#allocation7 + $0x30] sm:$0xff]
        %v1275 = vld [vmem:[#allocation7 + $0x38] sm:$0xff]
        %v1276 = vld [vmem:[#allocation7 + $0x40] sm:$0xff]
        %v1277 = vld [vmem:[#allocation7 + $0x48] sm:$0xff]
        %v1278 = vld [vmem:[#allocation7 + $0x50] sm:$0xff]
        %v1279 = vld [vmem:[#allocation7 + $0x58] sm:$0xff]
        %v1280 = vld [vmem:[#allocation7 + $0x60] sm:$0xff]
        %v1281 = vld [vmem:[#allocation7 + $0x68] sm:$0xff]
        %v1282 = vld [vmem:[#allocation7 + $0x70] sm:$0xff]
        %v1283 = vld [vmem:[#allocation7 + $0x78] sm:$0xff]
        %v1284 = vld [vmem:[#allocation7 + $0x80] sm:$0xff]
        %v1285 = vld [vmem:[#allocation7 + $0x88] sm:$0xff]
        %v1286 = vld [vmem:[#allocation7 + $0x90] sm:$0xff]
        %v1287 = vld [vmem:[#allocation7 + $0x98] sm:$0xff]
        %v1288 = vld [vmem:[#allocation7 + $0xa0] sm:$0xff]
        %v1289 = vld [vmem:[#allocation7 + $0xa8] sm:$0xff]
        %v1290 = vld [vmem:[#allocation7 + $0xb0] sm:$0xff]
        %v1291 = vld [vmem:[#allocation7 + $0xb8] sm:$0xff]
        %v1292 = vld [vmem:[#allocation7 + $0xc0] sm:$0xff]
        %v1293 = vld [vmem:[#allocation7 + $0xc8] sm:$0xff]
        %v1294 = vld [vmem:[#allocation7 + $0xd0] sm:$0xff]
        %v1295 = vld [vmem:[#allocation7 + $0xd8] sm:$0xff]
        %v1296 = vld [vmem:[#allocation7 + $0xe0] sm:$0xff]
        %v1297 = vld [vmem:[#allocation7 + $0xe8] sm:$0xff]
        %v1298 = vld [vmem:[#allocation7 + $0xf0] sm:$0xff]
        %v1299 = vld [vmem:[#allocation7 + $0xf8] sm:$0xff]
        %v1300 = vld [vmem:[#allocation7 + $0x100] sm:$0xff]
        %v1301 = vld [vmem:[#allocation7 + $0x108] sm:$0xff]
        %v1302 = vld [vmem:[#allocation7 + $0x110] sm:$0xff]
        %v1303 = vld [vmem:[#allocation7 + $0x118] sm:$0xff]
        %v1304 = vld [vmem:[#allocation7 + $0x120] sm:$0xff]
        %v1305 = vld [vmem:[#allocation7 + $0x128] sm:$0xff]
        %v1306 = vld [vmem:[#allocation7 + $0x130] sm:$0xff]
        %v1307 = vld [vmem:[#allocation7 + $0x138] sm:$0xff]
        %v1308 = vld [vmem:[#allocation7 + $0x140] sm:$0xff]
        %v1309 = vld [vmem:[#allocation7 + $0x148] sm:$0xff]
        %v1310 = vld [vmem:[#allocation7 + $0x150] sm:$0xff]
        %v1311 = vld [vmem:[#allocation7 + $0x158] sm:$0xff]
        %v1312 = vld [vmem:[#allocation7 + $0x160] sm:$0xff]
        %v1313 = vld [vmem:[#allocation7 + $0x168] sm:$0xff]
        %v1314 = vld [vmem:[#allocation7 + $0x170] sm:$0xff]
        %v1315 = vld [vmem:[#allocation7 + $0x178] sm:$0xff]
        %v1316 = vld [vmem:[#allocation7 + $0x180] sm:$0xff]
        %v1317 = vld [vmem:[#allocation7 + $0x188] sm:$0xff]
        %v1318 = vld [vmem:[#allocation7 + $0x190] sm:$0xff]
        %v1319 = vld [vmem:[#allocation7 + $0x198] sm:$0xff]
        %v1320 = vld [vmem:[#allocation7 + $0x1a0] sm:$0xff]
        %v1321 = vld [vmem:[#allocation7 + $0x1a8] sm:$0xff]
        %v1322 = vld [vmem:[#allocation7 + $0x1b0] sm:$0xff]
        %v1323 = vld [vmem:[#allocation7 + $0x1b8] sm:$0xff]
        %v1324 = vld [vmem:[#allocation7 + $0x1c0] sm:$0xff]
        %v1325 = vld [vmem:[#allocation7 + $0x1c8] sm:$0xff]
        %v1326 = vld [vmem:[#allocation7 + $0x1d0] sm:$0xff]
        %v1327 = vld [vmem:[#allocation7 + $0x1d8] sm:$0xff]
        %v1328 = vld [vmem:[#allocation7 + $0x1e0] sm:$0xff]
        %v1329 = vld [vmem:[#allocation7 + $0x1e8] sm:$0xff]
        %v1330 = vld [vmem:[#allocation7 + $0x1f0] sm:$0xff]
        %v1331 = vld [vmem:[#allocation7 + $0x1f8] sm:$0xff]
        %v1332 = vld [vmem:[%s5] sm:$0xff]
        %v1333 = vld [vmem:[%s5 + $0x8] sm:$0xff]
        %1335 = vset.pattern.permute.xlu0 0
        %1336 = vperm.xlu0 %1335, %v1332
        %v1337 = vpop.permute.xlu0 %1336
        %1340 = vset.pattern.permute.xlu0 0
        %1341 = vperm.xlu0 %1340, %v1333
        %v1342 = vpop.permute.xlu0 %1341
        %v1408 = vunpack.c.l.b16 %v1268
        %v1409 = vunpack.c.h.b16 %v1268
        %v1410 = vunpack.c.l.b16 %v1269
        %v1411 = vunpack.c.h.b16 %v1269
        %v1412 = vunpack.c.l.b16 %v1270
        %v1413 = vunpack.c.h.b16 %v1270
        %v1414 = vunpack.c.l.b16 %v1271
        %v1415 = vunpack.c.h.b16 %v1271
        %v1416 = vunpack.c.l.b16 %v1272
        %v1417 = vunpack.c.h.b16 %v1272
        %v1418 = vunpack.c.l.b16 %v1273
        %v1419 = vunpack.c.h.b16 %v1273
        %v1420 = vunpack.c.l.b16 %v1274
        %v1421 = vunpack.c.h.b16 %v1274
        %v1422 = vunpack.c.l.b16 %v1275
        %v1423 = vunpack.c.h.b16 %v1275
        %v1424 = vunpack.c.l.b16 %v1276
        %v1425 = vunpack.c.h.b16 %v1276
        %v1426 = vunpack.c.l.b16 %v1277
        %v1427 = vunpack.c.h.b16 %v1277
        %v1428 = vunpack.c.l.b16 %v1278
        %v1429 = vunpack.c.h.b16 %v1278
        %v1430 = vunpack.c.l.b16 %v1279
        %v1431 = vunpack.c.h.b16 %v1279
        %v1432 = vunpack.c.l.b16 %v1280
        %v1433 = vunpack.c.h.b16 %v1280
        %v1434 = vunpack.c.l.b16 %v1281
        %v1435 = vunpack.c.h.b16 %v1281
        %v1436 = vunpack.c.l.b16 %v1282
        %v1437 = vunpack.c.h.b16 %v1282
        %v1438 = vunpack.c.l.b16 %v1283
        %v1439 = vunpack.c.h.b16 %v1283
        %v1440 = vunpack.c.l.b16 %v1284
        %v1441 = vunpack.c.h.b16 %v1284
        %v1442 = vunpack.c.l.b16 %v1285
        %v1443 = vunpack.c.h.b16 %v1285
        %v1444 = vunpack.c.l.b16 %v1286
        %v1445 = vunpack.c.h.b16 %v1286
        %v1446 = vunpack.c.l.b16 %v1287
        %v1447 = vunpack.c.h.b16 %v1287
        %v1448 = vunpack.c.l.b16 %v1288
        %v1449 = vunpack.c.h.b16 %v1288
        %v1450 = vunpack.c.l.b16 %v1289
        %v1451 = vunpack.c.h.b16 %v1289
        %v1452 = vunpack.c.l.b16 %v1290
        %v1453 = vunpack.c.h.b16 %v1290
        %v1454 = vunpack.c.l.b16 %v1291
        %v1455 = vunpack.c.h.b16 %v1291
        %v1456 = vunpack.c.l.b16 %v1292
        %v1457 = vunpack.c.h.b16 %v1292
        %v1458 = vunpack.c.l.b16 %v1293
        %v1459 = vunpack.c.h.b16 %v1293
        %v1460 = vunpack.c.l.b16 %v1294
        %v1461 = vunpack.c.h.b16 %v1294
        %v1462 = vunpack.c.l.b16 %v1295
        %v1463 = vunpack.c.h.b16 %v1295
        %v1464 = vunpack.c.l.b16 %v1296
        %v1465 = vunpack.c.h.b16 %v1296
        %v1466 = vunpack.c.l.b16 %v1297
        %v1467 = vunpack.c.h.b16 %v1297
        %v1468 = vunpack.c.l.b16 %v1298
        %v1469 = vunpack.c.h.b16 %v1298
        %v1470 = vunpack.c.l.b16 %v1299
        %v1471 = vunpack.c.h.b16 %v1299
        %v1472 = vunpack.c.l.b16 %v1300
        %v1473 = vunpack.c.h.b16 %v1300
        %v1474 = vunpack.c.l.b16 %v1301
        %v1475 = vunpack.c.h.b16 %v1301
        %v1476 = vunpack.c.l.b16 %v1302
        %v1477 = vunpack.c.h.b16 %v1302
        %v1478 = vunpack.c.l.b16 %v1303
        %v1479 = vunpack.c.h.b16 %v1303
        %v1480 = vunpack.c.l.b16 %v1304
        %v1481 = vunpack.c.h.b16 %v1304
        %v1482 = vunpack.c.l.b16 %v1305
        %v1483 = vunpack.c.h.b16 %v1305
        %v1484 = vunpack.c.l.b16 %v1306
        %v1485 = vunpack.c.h.b16 %v1306
        %v1486 = vunpack.c.l.b16 %v1307
        %v1487 = vunpack.c.h.b16 %v1307
        %v1488 = vunpack.c.l.b16 %v1308
        %v1489 = vunpack.c.h.b16 %v1308
        %v1490 = vunpack.c.l.b16 %v1309
        %v1491 = vunpack.c.h.b16 %v1309
        %v1492 = vunpack.c.l.b16 %v1310
        %v1493 = vunpack.c.h.b16 %v1310
        %v1494 = vunpack.c.l.b16 %v1311
        %v1495 = vunpack.c.h.b16 %v1311
        %v1496 = vunpack.c.l.b16 %v1312
        %v1497 = vunpack.c.h.b16 %v1312
        %v1498 = vunpack.c.l.b16 %v1313
        %v1499 = vunpack.c.h.b16 %v1313
        %v1500 = vunpack.c.l.b16 %v1314
        %v1501 = vunpack.c.h.b16 %v1314
        %v1502 = vunpack.c.l.b16 %v1315
        %v1503 = vunpack.c.h.b16 %v1315
        %v1504 = vunpack.c.l.b16 %v1316
        %v1505 = vunpack.c.h.b16 %v1316
        %v1506 = vunpack.c.l.b16 %v1317
        %v1507 = vunpack.c.h.b16 %v1317
        %v1508 = vunpack.c.l.b16 %v1318
        %v1509 = vunpack.c.h.b16 %v1318
        %v1510 = vunpack.c.l.b16 %v1319
        %v1511 = vunpack.c.h.b16 %v1319
        %v1512 = vunpack.c.l.b16 %v1320
        %v1513 = vunpack.c.h.b16 %v1320
        %v1514 = vunpack.c.l.b16 %v1321
        %v1515 = vunpack.c.h.b16 %v1321
        %v1516 = vunpack.c.l.b16 %v1322
        %v1517 = vunpack.c.h.b16 %v1322
        %v1518 = vunpack.c.l.b16 %v1323
        %v1519 = vunpack.c.h.b16 %v1323
        %v1520 = vunpack.c.l.b16 %v1324
        %v1521 = vunpack.c.h.b16 %v1324
        %v1522 = vunpack.c.l.b16 %v1325
        %v1523 = vunpack.c.h.b16 %v1325
        %v1524 = vunpack.c.l.b16 %v1326
        %v1525 = vunpack.c.h.b16 %v1326
        %v1526 = vunpack.c.l.b16 %v1327
        %v1527 = vunpack.c.h.b16 %v1327
        %v1528 = vunpack.c.l.b16 %v1328
        %v1529 = vunpack.c.h.b16 %v1328
        %v1530 = vunpack.c.l.b16 %v1329
        %v1531 = vunpack.c.h.b16 %v1329
        %v1532 = vunpack.c.l.b16 %v1330
        %v1533 = vunpack.c.h.b16 %v1330
        %v1534 = vunpack.c.l.b16 %v1331
        %v1535 = vunpack.c.h.b16 %v1331
        %v1536 = vpack.c.b16 %v1410, %v1408
        %v1537 = vpack.c.b16 %v1411, %v1409
        %v1538 = vpack.c.b16 %v1414, %v1412
        %v1539 = vpack.c.b16 %v1415, %v1413
        %v1540 = vpack.c.b16 %v1418, %v1416
        %v1541 = vpack.c.b16 %v1419, %v1417
        %v1542 = vpack.c.b16 %v1422, %v1420
        %v1543 = vpack.c.b16 %v1423, %v1421
        %v1544 = vpack.c.b16 %v1426, %v1424
        %v1545 = vpack.c.b16 %v1427, %v1425
        %v1546 = vpack.c.b16 %v1430, %v1428
        %v1547 = vpack.c.b16 %v1431, %v1429
        %v1548 = vpack.c.b16 %v1434, %v1432
        %v1549 = vpack.c.b16 %v1435, %v1433
        %v1550 = vpack.c.b16 %v1438, %v1436
        %v1551 = vpack.c.b16 %v1439, %v1437
        %v1552 = vpack.c.b16 %v1442, %v1440
        %v1553 = vpack.c.b16 %v1443, %v1441
        %v1554 = vpack.c.b16 %v1446, %v1444
        %v1555 = vpack.c.b16 %v1447, %v1445
        %v1556 = vpack.c.b16 %v1450, %v1448
        %v1557 = vpack.c.b16 %v1451, %v1449
        %v1558 = vpack.c.b16 %v1454, %v1452
        %v1559 = vpack.c.b16 %v1455, %v1453
        %v1560 = vpack.c.b16 %v1458, %v1456
        %v1561 = vpack.c.b16 %v1459, %v1457
        %v1562 = vpack.c.b16 %v1462, %v1460
        %v1563 = vpack.c.b16 %v1463, %v1461
        %v1564 = vpack.c.b16 %v1466, %v1464
        %v1565 = vpack.c.b16 %v1467, %v1465
        %v1566 = vpack.c.b16 %v1470, %v1468
        %v1567 = vpack.c.b16 %v1471, %v1469
        %v1568 = vpack.c.b16 %v1474, %v1472
        %v1569 = vpack.c.b16 %v1475, %v1473
        %v1570 = vpack.c.b16 %v1478, %v1476
        %v1571 = vpack.c.b16 %v1479, %v1477
        %v1572 = vpack.c.b16 %v1482, %v1480
        %v1573 = vpack.c.b16 %v1483, %v1481
        %v1574 = vpack.c.b16 %v1486, %v1484
        %v1575 = vpack.c.b16 %v1487, %v1485
        %v1576 = vpack.c.b16 %v1490, %v1488
        %v1577 = vpack.c.b16 %v1491, %v1489
        %v1578 = vpack.c.b16 %v1494, %v1492
        %v1579 = vpack.c.b16 %v1495, %v1493
        %v1580 = vpack.c.b16 %v1498, %v1496
        %v1581 = vpack.c.b16 %v1499, %v1497
        %v1582 = vpack.c.b16 %v1502, %v1500
        %v1583 = vpack.c.b16 %v1503, %v1501
        %v1584 = vpack.c.b16 %v1506, %v1504
        %v1585 = vpack.c.b16 %v1507, %v1505
        %v1586 = vpack.c.b16 %v1510, %v1508
        %v1587 = vpack.c.b16 %v1511, %v1509
        %v1588 = vpack.c.b16 %v1514, %v1512
        %v1589 = vpack.c.b16 %v1515, %v1513
        %v1590 = vpack.c.b16 %v1518, %v1516
        %v1591 = vpack.c.b16 %v1519, %v1517
        %v1592 = vpack.c.b16 %v1522, %v1520
        %v1593 = vpack.c.b16 %v1523, %v1521
        %v1594 = vpack.c.b16 %v1526, %v1524
        %v1595 = vpack.c.b16 %v1527, %v1525
        %v1596 = vpack.c.b16 %v1530, %v1528
        %v1597 = vpack.c.b16 %v1531, %v1529
        %v1598 = vpack.c.b16 %v1534, %v1532
        %v1599 = vpack.c.b16 %v1535, %v1533
        %v1663 = vsel %vm1186, %v1267, 0
        %vm1665 = vcmask 1046528
        %vm1666 = vcmask 1047552
        %v1667 = vsel %vm1665, 4294967295, 65535
        %v1668 = vsel %vm1666, %v1667, 0
        %v1670 = vand.u32 %v1598, %v1668
        %v1673 = vand.u32 %v1599, %v1668
        %1675 = vmatprep.subr.bf16.mxu0 %v1537
        %1676 = vmatpush1.bf16.msra.mxu0 %v1536
        %1677 = vmatprep.subr.bf16.mxu0 %v1539
        %1678 = vmatpush1.bf16.msra.mxu0 %v1538
        %1679 = vmatprep.subr.bf16.mxu0 %v1541
        %1680 = vmatpush1.bf16.msra.mxu0 %v1540
        %1681 = vmatprep.subr.bf16.mxu0 %v1543
        %1682 = vmatpush1.bf16.msra.mxu0 %v1542
        %1683 = vmatprep.subr.bf16.mxu0 %v1545
        %1684 = vmatpush1.bf16.msra.mxu0 %v1544
        %1685 = vmatprep.subr.bf16.mxu0 %v1547
        %1686 = vmatpush1.bf16.msra.mxu0 %v1546
        %1687 = vmatprep.subr.bf16.mxu0 %v1549
        %1688 = vmatpush1.bf16.msra.mxu0 %v1548
        %1689 = vmatprep.subr.bf16.mxu0 %v1551
        %1690 = vmatpush1.bf16.msra.mxu0 %v1550
        %1691 = vmatprep.subr.bf16.mxu0 %v1553
        %1692 = vmatpush1.bf16.msra.mxu0 %v1552
        %1693 = vmatprep.subr.bf16.mxu0 %v1555
        %1694 = vmatpush1.bf16.msra.mxu0 %v1554
        %1695 = vmatprep.subr.bf16.mxu0 %v1557
        %1696 = vmatpush1.bf16.msra.mxu0 %v1556
        %1697 = vmatprep.subr.bf16.mxu0 %v1559
        %1698 = vmatpush1.bf16.msra.mxu0 %v1558
        %1699 = vmatprep.subr.bf16.mxu0 %v1561
        %1700 = vmatpush1.bf16.msra.mxu0 %v1560
        %1701 = vmatprep.subr.bf16.mxu0 %v1563
        %1702 = vmatpush1.bf16.msra.mxu0 %v1562
        %1703 = vmatprep.subr.bf16.mxu0 %v1565
        %1704 = vmatpush1.bf16.msra.mxu0 %v1564
        %1705 = vmatprep.subr.bf16.mxu0 %v1567
        %1706 = vmatpush1.bf16.msra.mxu0 %v1566
        %1707 = vmatprep.mubr.bf16.mxu0 %v1265
        %1708 = vmatmul.mubr.bf16.gmra.mrb[0].mxu0 %v1264
        %v1709 = vpop.f32.mrb[0].mxu0
        %v1710 = vadd.f32 %v1337, %v1709
        %v1711 = vpop.f32.mrb[0].mxu0
        %v1712 = vadd.f32 %v1337, %v1711
        %v1713 = vpop.f32.mrb[0].mxu0
        %v1714 = vadd.f32 %v1342, %v1713
        %v1715 = vpop.f32.mrb[0].mxu0
        %v1716 = vadd.f32 %v1342, %v1715
        %1717 = vdwg.mxu0
        %1718 = vmatprep.subr.bf16.mxu0 %v1569
        %1719 = vmatpush1.bf16.msra.mxu0 %v1568
        %1720 = vmatprep.subr.bf16.mxu0 %v1571
        %1721 = vmatpush1.bf16.msra.mxu0 %v1570
        %1722 = vmatprep.subr.bf16.mxu0 %v1573
        %1723 = vmatpush1.bf16.msra.mxu0 %v1572
        %1724 = vmatprep.subr.bf16.mxu0 %v1575
        %1725 = vmatpush1.bf16.msra.mxu0 %v1574
        %1726 = vmatprep.subr.bf16.mxu0 %v1577
        %1727 = vmatpush1.bf16.msra.mxu0 %v1576
        %1728 = vmatprep.subr.bf16.mxu0 %v1579
        %1729 = vmatpush1.bf16.msra.mxu0 %v1578
        %1730 = vmatprep.subr.bf16.mxu0 %v1581
        %1731 = vmatpush1.bf16.msra.mxu0 %v1580
        %1732 = vmatprep.subr.bf16.mxu0 %v1583
        %1733 = vmatpush1.bf16.msra.mxu0 %v1582
        %1734 = vmatprep.subr.bf16.mxu0 %v1585
        %1735 = vmatpush1.bf16.msra.mxu0 %v1584
        %1736 = vmatprep.subr.bf16.mxu0 %v1587
        %1737 = vmatpush1.bf16.msra.mxu0 %v1586
        %1738 = vmatprep.subr.bf16.mxu0 %v1589
        %1739 = vmatpush1.bf16.msra.mxu0 %v1588
        %1740 = vmatprep.subr.bf16.mxu0 %v1591
        %1741 = vmatpush1.bf16.msra.mxu0 %v1590
        %1742 = vmatprep.subr.bf16.mxu0 %v1593
        %1743 = vmatpush1.bf16.msra.mxu0 %v1592
        %1744 = vmatprep.subr.bf16.mxu0 %v1595
        %1745 = vmatpush1.bf16.msra.mxu0 %v1594
        %1746 = vmatprep.subr.bf16.mxu0 %v1597
        %1747 = vmatpush1.bf16.msra.mxu0 %v1596
        %1748 = vmatprep.subr.bf16.mxu0 %v1673
        %1749 = vmatpush1.bf16.msra.mxu0 %v1670
        %1750 = vmatprep.mubr.bf16.mxu0 %v1663
        %1751 = vmatmul.mubr.bf16.gmra.mrb[0].mxu0 %v1266
        %v1752 = vpop.f32.mrb[0].mxu0
        %v1753 = vadd.f32 %v1710, %v1752
        %v1754 = vpop.f32.mrb[0].mxu0
        %v1755 = vadd.f32 %v1712, %v1754
        %v1756 = vpop.f32.mrb[0].mxu0
        %v1757 = vadd.f32 %v1714, %v1756
        %v1758 = vpop.f32.mrb[0].mxu0
        %v1759 = vadd.f32 %v1716, %v1758
        %1760 = vdwg.mxu0
        %vm1761 = vcmp.gt.f32.partialorder %v1753, 0.0
        %vm1762 = vcmp.gt.f32.partialorder %v1755, 0.0
        %vm1763 = vcmp.gt.f32.partialorder %v1757, 0.0
        %vm1764 = vcmp.gt.f32.partialorder %v1759, 0.0
        %v1765 = vmul.f32 %v1753, 0.2
        %v1766 = vmul.f32 %v1755, 0.2
        %v1767 = vmul.f32 %v1757, 0.2
        %v1768 = vmul.f32 %v1759, 0.2
        %v1769 = vsel %vm1761, %v1753, %v1765
        %v1770 = vsel %vm1762, %v1755, %v1766
        %v1771 = vsel %vm1763, %v1757, %v1767
        %v1772 = vsel %vm1764, %v1759, %v1768
        %1773 = vst [vmem:[%s371] sm:$0xff] %v1769
        %1774 = vst [vmem:[%s371 + $0x8] sm:$0xff] %v1770
        %1775 = vst [vmem:[%s371 + $0x10] sm:$0xff] %v1771
        %1776 = vst [vmem:[%s371 + $0x18] sm:$0xff] %v1772
        %s1777 = sand.u32 %s212, 1
        %s1778 = scalar_lea.sflag [#allocation4], %s1777
        %s1779 = sand.u32 %s212, 1
        %s1780 = smul.addr %s1779, 32
        %s1781 = scalar_lea.vmem [#allocation8], %s1780
        // Predicated region
        $region61: #{tpu_custom_call.1} parent=47 // pred_check
          %p1782 = pneg %p222
        $region62: #{tpu_custom_call.1} parent=47 // pred_check_branch
          %1784 = sbr.rel (%p1782) target = $region64
        $region63: #{tpu_custom_call.1} parent=47 // pred_region
          %s1785 = smul.u32 2, %s32
          %s1787 = ssub.s32 512, 512
          %1788 = vsyncadd %s1778, %s1787
          %s1789 = smul.addr %s31, 8
          %s1790 = sadd.s32 %s1785, %s1789
          %s1791 = smul.addr %s1790, 128
          %s1792 = scalar_lea.hbm %s7, %s1791
          %s1793 = sshll.u32 %s1781, 4
          %s1794 = int_to_ptr.vmem [resolvable:$true] %s1793
          %1799 = dma.vmem_to_hbm [thread:$0]  %s1794, 512, %s1792, %s1778, 256, 512, 16
        $region64: #{tpu_custom_call.1} parent=47 // pred_fallthru
          _
      $region48: #{tpu_custom_call.1} parent=5 // pred_fallthru
        _
      %p1800 = scmp.le.s32.totalorder 2, %s22
      // Predicated region
      $region65: #{tpu_custom_call.1} parent=5 // pred_check
        %p1801 = pneg %p1800
      $region66: #{tpu_custom_call.1} parent=5 // pred_check_branch
        %1803 = sbr.rel (%p1801) target = $region68
      $region67: #{tpu_custom_call.1} parent=5 // pred_region
        %s1804 = ssub.s32 %s22, 2
        // Predicated region
        $region69: #{tpu_custom_call.1} parent=67 // pred_check
          %p1805 = pneg %p228
        $region70: #{tpu_custom_call.1} parent=67 // pred_check_branch
          %1807 = sbr.rel (%p1805) target = $region72
        $region71: #{tpu_custom_call.1} parent=67 // pred_region
          %s1808 = sand.u32 %s213, 1
          %s1809 = scalar_lea.sflag [#allocation4], %s1808
          %s1810 = sand.u32 %s213, 1
          %s1811 = smul.addr %s1810, 32
          %s1812 = scalar_lea.vmem [#allocation8], %s1811
          %1813 = dma.done %s1809, 512
        $region72: #{tpu_custom_call.1} parent=67 // pred_fallthru
          _
      $region68: #{tpu_custom_call.1} parent=5 // pred_fallthru
        _
    $region6: #{tpu_custom_call.1} parent=1 // loop_footer
      %s26 = sadd.s32 1, %s22
    $region7: #{tpu_custom_call.1} parent=1 // loop_footer_branch
      %21 = sbr.rel target = $region3
    $region8: #{tpu_custom_call.1} parent=1 // loop_exit
      _
    %1814 = vsyncpa [#allocation3], 1
    %s1815 = scalar_lea.sflag [#allocation3], 1
    %1816 = vsyncpa %s1815, 1
    %1817 = vsyncpa [#allocation6], 1
    %s1818 = scalar_lea.sflag [#allocation6], 1
    %1819 = vsyncpa %s1818, 1
    %1820 = vsyncpa [#allocation4], 1
    %s1821 = scalar_lea.sflag [#allocation4], 1
    %1822 = vsyncpa %s1821, 1

</llo_original>
